<compile_context>
chip_gen: v7x
topology: tpu7x:2x2x1
jax: 0.10.0
libtpu: 0.0.40
codegen_flags: <defaults>
</compile_context>

<pallas_src>
import functools

import numpy as np
import jax
import jax.numpy as jnp
from jax import lax
from jax.experimental import pallas as pl
from jax.experimental.pallas import tpu as pltpu


def _round_up(x, m):
    return (x + m - 1) // m * m


def unet_block_kernel(x_ref, scale_ref, shift_ref, w_ref, g_ref, be_ref, m_ref,
                      o_ref, acc_ref, *, H, W, eps):
    """One batch element per grid step (channels in sublanes, spatial in lanes).

    x_ref     : (1, C_in_p, NF)       bf16  zero-padded image, spatial flattened
    scale_ref : (1, C_out, 1)         f32   dense_timestep(te) per batch (hoisted)
    shift_ref : (1, C_out, 1)         f32   bi + bp * dense_timestep(te)
    w_ref     : (9, 2*C_out, C_in_p)  bf16  per-tap transposed fused conv weights
                                            rows [0:C_out) -> conv2d_multiplied_by_param
                                            rows [C_out:)  -> conv2d_img
    g_ref     : (C_out, NPP)          f32   LayerNorm gamma (0 in pad lanes)
    be_ref    : (C_out, NPP)          f32   LayerNorm beta  (0 in pad lanes)
    m_ref     : (1, NPP)              f32   1.0 on valid output lanes, else 0.0
    o_ref     : (1, C_out, NPP)       bf16
    acc_ref   : (2*C_out, NPP)        f32   VMEM conv accumulator scratch
    """
    WP = W + 2
    C_out = o_ref.shape[1]
    NPP = o_ref.shape[2]

    x = x_ref[0]                                       # (C_in_p, NF)

    # 9 accumulating per-tap matmuls (no im2col buffer).  The += on a VMEM
    # scratch lets Mosaic keep the accumulation on the MXU result path.
    acc_ref[...] = jnp.zeros_like(acc_ref)
    for kh in range(3):
        for kw in range(3):
            off = kh * WP + kw                         # static lane offset
            acc_ref[...] += jnp.dot(
                w_ref[kh * 3 + kw], x[:, off:off + NPP],
                preferred_element_type=jnp.float32)    # (2*C_out, NPP)

    acc = acc_ref[...]
    conv_p = acc[:C_out, :]                            # conv2d_multiplied_by_param (no bias)
    conv_i = acc[C_out:, :]                            # conv2d_img (no bias)
    # x_origin + x_param * dense_timestep(te); biases folded into shift.
    s = conv_i + conv_p * scale_ref[0] + shift_ref[0]  # (C_out, NPP)

    # Two-pass masked LayerNorm over (C_out, H, W); garbage lanes excluded.
    mask = m_ref[...]                                  # (1, NPP)
    n = C_out * H * W
    mean = jnp.sum(s * mask, keepdims=True) / n        # (1, 1)
    d = (s - mean) * mask
    var = jnp.sum(d * d, keepdims=True) / n            # (1, 1)
    normed = (s - mean) * lax.rsqrt(var + eps)

    # Affine + ReLU.  gamma/beta are exactly 0 on the garbage lanes, so those
    # lanes come out exactly 0 in the stored output.
    out = jnp.maximum(normed * g_ref[...] + be_ref[...], 0.0)
    o_ref[0] = out.astype(o_ref.dtype)


def unet_block_pallas(x_nchw, timestep_embedding,
                      wp_hwio, bp, wi_hwio, bi, wt, bt,
                      gamma_chw, beta_chw, *, eps=1e-5):
    """Returns the lane-dense padded output (B, C_out, NPP) in bf16.

    Lane k maps to (h, w) = (k // (W+2), k % (W+2)) for k < H*(W+2); every other
    lane is exactly 0 by construction.  Downstream ops consume this padded
    layout (or fuse the crop into the next kernel) — no wrapper-side crop copy.
    """
    B, C_in, H, W = x_nchw.shape
    C_out = wp_hwio.shape[-1]
    WP = W + 2
    NP = H * WP                      # valid lane width
    NPP = _round_up(NP, 128)         # lane-dense (128-multiple) output width
    C_in_p = _round_up(C_in, 16)     # bf16 sublane packing
    NF = 2 * WP + 2 + NPP            # flattened padded image + tail so the last
                                     # (kh=2, kw=2) tap slice of width NPP fits

    # ---- glue: layout only, no heavy compute ------------------------------
    xp = jnp.pad(x_nchw.astype(jnp.bfloat16),
                 ((0, 0), (0, C_in_p - C_in), (1, 1), (1, 1)))
    xflat = xp.reshape(B, C_in_p, (H + 2) * WP)
    xflat = jnp.pad(xflat, ((0, 0), (0, 0), (0, NF - (H + 2) * WP)))

    # Per-tap fused transposed weights (zero-padded input channels).
    wpad = ((0, 0), (0, 0), (0, C_in_p - C_in), (0, 0))
    wp_t = jnp.transpose(jnp.pad(wp_hwio, wpad).reshape(9, C_in_p, C_out), (0, 2, 1))
    wi_t = jnp.transpose(jnp.pad(wi_hwio, wpad).reshape(9, C_in_p, C_out), (0, 2, 1))
    w_taps = jnp.concatenate([wp_t, wi_t], axis=1).astype(jnp.bfloat16)  # (9,2Co,Cip)

    # Hoisted timestep dense layer (one matmul for the batch) + folded biases.
    t = jnp.dot(timestep_embedding.astype(jnp.float32), wt.astype(jnp.float32),
                precision=lax.Precision.HIGHEST) + bt.astype(jnp.float32)  # (B,C_out)
    scale = t.reshape(B, C_out, 1)
    shift = (bi.astype(jnp.float32)[None, :]
             + bp.astype(jnp.float32)[None, :] * t).reshape(B, C_out, 1)

    def prep_const(a):   # (C_out, H, W) -> (C_out, NPP), zeros in pad lanes
        a = jnp.pad(a.astype(jnp.float32), ((0, 0), (0, 0), (0, 2))).reshape(C_out, NP)
        return jnp.pad(a, ((0, 0), (0, NPP - NP)))

    g_flat = prep_const(gamma_chw)
    be_flat = prep_const(beta_chw)
    mask = jnp.pad(jnp.ones((1, H, W), jnp.float32),
                   ((0, 0), (0, 0), (0, 2))).reshape(1, NP)
    mask = jnp.pad(mask, ((0, 0), (0, NPP - NP)))

    kernel = functools.partial(unet_block_kernel, H=H, W=W, eps=eps)

    matmul_flops = 2 * B * (2 * C_out) * (9 * C_in_p) * NPP
    bytes_accessed = (xflat.size * 2 + w_taps.size * 2
                      + (g_flat.size + be_flat.size + mask.size) * 4
                      + (scale.size + shift.size) * 4
                      + B * C_out * NPP * 2)
    cost = pl.CostEstimate(flops=matmul_flops + 12 * B * C_out * NPP,
                           transcendentals=B,
                           bytes_accessed=bytes_accessed)

    in_specs = [
        pl.BlockSpec((1, C_in_p, NF), lambda b: (b, 0, 0)),
        pl.BlockSpec((1, C_out, 1), lambda b: (b, 0, 0)),
        pl.BlockSpec((1, C_out, 1), lambda b: (b, 0, 0)),
        pl.BlockSpec((9, 2 * C_out, C_in_p), lambda b: (0, 0, 0)),
        pl.BlockSpec((C_out, NPP), lambda b: (0, 0)),
        pl.BlockSpec((C_out, NPP), lambda b: (0, 0)),
        pl.BlockSpec((1, NPP), lambda b: (0, 0)),
    ]

    # TODO(synk): at production shapes (C=128..256, larger spatial) add a
    # spatial row-tile grid axis ("arbitrary") with partial sum/sumsq LayerNorm,
    # single-buffer (pl.Buffered(1)) the grid-invariant operands, and sweep the
    # pipeline depth of the varying operands, so v7x's two TensorCores get real
    # pipeline depth within its 64 MiB VMEM.
    call = pl.pallas_call(
        kernel,
        out_shape=jax.ShapeDtypeStruct((B, C_out, NPP), jnp.bfloat16),
        grid_spec=pltpu.PrefetchScalarGridSpec(
            num_scalar_prefetch=0,
            grid=(B,),
            in_specs=in_specs,
            out_specs=pl.BlockSpec((1, C_out, NPP), lambda b: (b, 0, 0)),
            scratch_shapes=[pltpu.VMEM((2 * C_out, NPP), jnp.float32)]),
        compiler_params=pltpu.CompilerParams(
            dimension_semantics=("parallel",),
            vmem_limit_bytes=48 * 1024 * 1024),
        cost_estimate=cost,
    )
    return call(xflat, scale, shift, w_taps, g_flat, be_flat, mask)


def crop_to_nchw(out_padded, H, W):
    """Verification helper: padded lane layout -> NCHW.  In the full Unet the
    next op consumes the padded layout directly / the crop is fused."""
    B, C_out, _ = out_padded.shape
    WP = W + 2
    return out_padded[:, :, :H * WP].reshape(B, C_out, H, WP)[:, :, :, :W]


def unet_block_reference(x_nchw, te, wp_hwio, bp, wi_hwio, bi, wt, bt,
                         gamma_chw, beta_chw, eps=1e-5):
    """Pure-JAX f32 reference mirroring the PyTorch forward."""
    x = jnp.transpose(x_nchw.astype(jnp.float32), (0, 2, 3, 1))
    dn = ("NHWC", "HWIO", "NHWC")
    cp = lax.conv_general_dilated(x, wp_hwio, (1, 1), "SAME",
                                  dimension_numbers=dn,
                                  precision=lax.Precision.HIGHEST) + bp
    ci = lax.conv_general_dilated(x, wi_hwio, (1, 1), "SAME",
                                  dimension_numbers=dn,
                                  precision=lax.Precision.HIGHEST) + bi
    t = jnp.dot(te.astype(jnp.float32), wt,
                precision=lax.Precision.HIGHEST) + bt          # (B, C_out)
    s = ci + cp * t[:, None, None, :]
    mean = jnp.mean(s, axis=(1, 2, 3), keepdims=True)
    var = jnp.mean((s - mean) ** 2, axis=(1, 2, 3), keepdims=True)
    g = jnp.transpose(gamma_chw, (1, 2, 0))
    be = jnp.transpose(beta_chw, (1, 2, 0))
    out = jnp.maximum((s - mean) / jnp.sqrt(var + eps) * g + be, 0.0)
    return jnp.transpose(out, (0, 3, 1, 2))


if __name__ == "__main__":
    # Small shapes consistent with the module.
    B, C_in, C_out, T, H = 2, 4, 8, 8, 16
    W = H

    key = jax.random.PRNGKey(0)
    keys = jax.random.split(key, 10)

    x = jax.random.normal(keys[0], (B, C_in, H, W), jnp.float32)
    te = jax.random.normal(keys[1], (B, T), jnp.float32)

    wp_hwio = 0.1 * jax.random.normal(keys[2], (3, 3, C_in, C_out), jnp.float32)
    bp = 0.1 * jax.random.normal(keys[3], (C_out,), jnp.float32)
    wi_hwio = 0.1 * jax.random.normal(keys[4], (3, 3, C_in, C_out), jnp.float32)
    bi = 0.1 * jax.random.normal(keys[5], (C_out,), jnp.float32)
    wt = 0.1 * jax.random.normal(keys[6], (T, C_out), jnp.float32)
    bt = 0.1 * jax.random.normal(keys[7], (C_out,), jnp.float32)
    gamma_chw = 1.0 + 0.1 * jax.random.normal(keys[8], (C_out, H, W), jnp.float32)
    beta_chw = 0.1 * jax.random.normal(keys[9], (C_out, H, W), jnp.float32)

    # The kernel runs the convolutions with bf16 operands (f32 MXU accumulate);
    # round the conv operands once so the f32 reference sees the same effective
    # inputs and the comparison checks structure, not bf16 quantization noise.
    q = lambda a: a.astype(jnp.bfloat16).astype(jnp.float32)  # noqa: E731
    x, wp_hwio, wi_hwio = q(x), q(wp_hwio), q(wi_hwio)

    fwd = jax.jit(unet_block_pallas)
    out_pad = jax.block_until_ready(
        fwd(x, te, wp_hwio, bp, wi_hwio, bi, wt, bt, gamma_chw, beta_chw))

    ref = jax.block_until_ready(
        unet_block_reference(x, te, wp_hwio, bp, wi_hwio, bi, wt, bt,
                             gamma_chw, beta_chw))

    out_pad_f32 = np.asarray(out_pad.astype(jnp.float32))
    # Contract: every lane past the valid H*(W+2) region is exactly 0.
    NP = H * (W + 2)
    np.testing.assert_array_equal(out_pad_f32[:, :, NP:], 0.0)

    # Verification-only crop back to NCHW (kernel output is bf16).
    out = np.asarray(crop_to_nchw(out_pad.astype(jnp.float32), H, W))
    np.testing.assert_allclose(out, np.asarray(ref), rtol=1e-2, atol=1e-2)
    print("KERNEL_OK")
</pallas_src>

<mosaic_0001>
module attributes {stable_mosaic.version = 11 : i64} {
  func.func @unet_block_kernel(%arg0: i32, %arg1: memref<1x16x422xbf16, #tpu.memory_space<vmem>>, %arg2: memref<1x8x1xf32, #tpu.memory_space<vmem>>, %arg3: memref<1x8x1xf32, #tpu.memory_space<vmem>>, %arg4: memref<9x16x16xbf16, #tpu.memory_space<vmem>>, %arg5: memref<8x384xf32, #tpu.memory_space<vmem>>, %arg6: memref<8x384xf32, #tpu.memory_space<vmem>>, %arg7: memref<1x384xf32, #tpu.memory_space<vmem>>, %arg8: memref<1x8x384xbf16, #tpu.memory_space<vmem>>, %arg9: memref<16x384xf32, #tpu.memory_space<vmem>>) attributes {dimension_semantics = [#tpu.dimension_semantics<parallel>], iteration_bounds = array<i64: 2>, scalar_prefetch = 0 : i64, scratch_operands = 1 : i64, tpu.core_type = #tpu.core_type<tc>, window_params = [{transform_indices = @transform_0, window_bounds = array<i64: 1, 16, 422>}, {transform_indices = @transform_1, window_bounds = array<i64: 1, 8, 1>}, {transform_indices = @transform_2, window_bounds = array<i64: 1, 8, 1>}, {pipeline_mode = #tpu.pipeline_mode<synchronous>, transform_indices = @transform_3, window_bounds = array<i64: 9, 16, 16>}, {pipeline_mode = #tpu.pipeline_mode<synchronous>, transform_indices = @transform_4, window_bounds = array<i64: 8, 384>}, {pipeline_mode = #tpu.pipeline_mode<synchronous>, transform_indices = @transform_5, window_bounds = array<i64: 8, 384>}, {pipeline_mode = #tpu.pipeline_mode<synchronous>, transform_indices = @transform_6, window_bounds = array<i64: 1, 384>}, {transform_indices = @transform_7, window_bounds = array<i64: 1, 8, 384>}]} {
    %c0 = arith.constant 0 : index
    %c0_0 = arith.constant 0 : index
    %c0_1 = arith.constant 0 : index
    %0 = vector.load %arg1[%c0, %c0_0, %c0_1] : memref<1x16x422xbf16, #tpu.memory_space<vmem>>, vector<1x16x422xbf16>
    %1 = vector.shape_cast %0 : vector<1x16x422xbf16> to vector<16x422xbf16>
    %cst = arith.constant 0.000000e+00 : f32
    %2 = vector.broadcast %cst : f32 to vector<16x384xf32>
    %c0_2 = arith.constant 0 : index
    %c0_3 = arith.constant 0 : index
    %3 = vector.load %arg9[%c0_2, %c0_3] : memref<16x384xf32, #tpu.memory_space<vmem>>, vector<16x384xf32>
    tpu.vector_store %arg9[%c0_2, %c0_3], %2 {strides = array<i32>} : memref<16x384xf32, #tpu.memory_space<vmem>>, vector<16x384xf32>,
    %c0_4 = arith.constant 0 : index
    %c0_5 = arith.constant 0 : index
    %4 = vector.load %arg9[%c0_4, %c0_5] : memref<16x384xf32, #tpu.memory_space<vmem>>, vector<16x384xf32>
    %c0_6 = arith.constant 0 : index
    %c0_7 = arith.constant 0 : index
    %c0_8 = arith.constant 0 : index
    %5 = vector.load %arg4[%c0_6, %c0_7, %c0_8] : memref<9x16x16xbf16, #tpu.memory_space<vmem>>, vector<1x16x16xbf16>
    %6 = vector.shape_cast %5 : vector<1x16x16xbf16> to vector<16x16xbf16>
    %7 = vector.extract_strided_slice %1 {offsets = [0, 0], sizes = [16, 384], strides = [1, 1]} : vector<16x422xbf16> to vector<16x384xbf16>
    %cst_9 = arith.constant dense<0.000000e+00> : vector<16x384xf32>
    %8 = tpu.matmul %6, %7, %cst_9 {dimension_numbers = #tpu.dot_dimension_numbers<[1], [0], [0], [1], [0, 0, 1, 1], [], []>} : vector<16x16xbf16>, vector<16x384xbf16>, vector<16x384xf32> -> vector<16x384xf32>
    %9 = arith.addf %4, %8 : vector<16x384xf32>
    %c0_10 = arith.constant 0 : index
    %c0_11 = arith.constant 0 : index
    %10 = vector.load %arg9[%c0_10, %c0_11] : memref<16x384xf32, #tpu.memory_space<vmem>>, vector<16x384xf32>
    tpu.vector_store %arg9[%c0_10, %c0_11], %9 {strides = array<i32>} : memref<16x384xf32, #tpu.memory_space<vmem>>, vector<16x384xf32>,
    %c0_12 = arith.constant 0 : index
    %c0_13 = arith.constant 0 : index
    %11 = vector.load %arg9[%c0_12, %c0_13] : memref<16x384xf32, #tpu.memory_space<vmem>>, vector<16x384xf32>
    %c1 = arith.constant 1 : index
    %c0_14 = arith.constant 0 : index
    %c0_15 = arith.constant 0 : index
    %12 = vector.load %arg4[%c1, %c0_14, %c0_15] : memref<9x16x16xbf16, #tpu.memory_space<vmem>>, vector<1x16x16xbf16>
    %13 = vector.shape_cast %12 : vector<1x16x16xbf16> to vector<16x16xbf16>
    %14 = vector.extract_strided_slice %1 {offsets = [0, 1], sizes = [16, 384], strides = [1, 1]} : vector<16x422xbf16> to vector<16x384xbf16>
    %cst_16 = arith.constant dense<0.000000e+00> : vector<16x384xf32>
    %15 = tpu.matmul %13, %14, %cst_16 {dimension_numbers = #tpu.dot_dimension_numbers<[1], [0], [0], [1], [0, 0, 1, 1], [], []>} : vector<16x16xbf16>, vector<16x384xbf16>, vector<16x384xf32> -> vector<16x384xf32>
    %16 = arith.addf %11, %15 : vector<16x384xf32>
    %c0_17 = arith.constant 0 : index
    %c0_18 = arith.constant 0 : index
    %17 = vector.load %arg9[%c0_17, %c0_18] : memref<16x384xf32, #tpu.memory_space<vmem>>, vector<16x384xf32>
    tpu.vector_store %arg9[%c0_17, %c0_18], %16 {strides = array<i32>} : memref<16x384xf32, #tpu.memory_space<vmem>>, vector<16x384xf32>,
    %c0_19 = arith.constant 0 : index
    %c0_20 = arith.constant 0 : index
    %18 = vector.load %arg9[%c0_19, %c0_20] : memref<16x384xf32, #tpu.memory_space<vmem>>, vector<16x384xf32>
    %c2 = arith.constant 2 : index
    %c0_21 = arith.constant 0 : index
    %c0_22 = arith.constant 0 : index
    %19 = vector.load %arg4[%c2, %c0_21, %c0_22] : memref<9x16x16xbf16, #tpu.memory_space<vmem>>, vector<1x16x16xbf16>
    %20 = vector.shape_cast %19 : vector<1x16x16xbf16> to vector<16x16xbf16>
    %21 = vector.extract_strided_slice %1 {offsets = [0, 2], sizes = [16, 384], strides = [1, 1]} : vector<16x422xbf16> to vector<16x384xbf16>
    %cst_23 = arith.constant dense<0.000000e+00> : vector<16x384xf32>
    %22 = tpu.matmul %20, %21, %cst_23 {dimension_numbers = #tpu.dot_dimension_numbers<[1], [0], [0], [1], [0, 0, 1, 1], [], []>} : vector<16x16xbf16>, vector<16x384xbf16>, vector<16x384xf32> -> vector<16x384xf32>
    %23 = arith.addf %18, %22 : vector<16x384xf32>
    %c0_24 = arith.constant 0 : index
    %c0_25 = arith.constant 0 : index
    %24 = vector.load %arg9[%c0_24, %c0_25] : memref<16x384xf32, #tpu.memory_space<vmem>>, vector<16x384xf32>
    tpu.vector_store %arg9[%c0_24, %c0_25], %23 {strides = array<i32>} : memref<16x384xf32, #tpu.memory_space<vmem>>, vector<16x384xf32>,
    %c0_26 = arith.constant 0 : index
    %c0_27 = arith.constant 0 : index
    %25 = vector.load %arg9[%c0_26, %c0_27] : memref<16x384xf32, #tpu.memory_space<vmem>>, vector<16x384xf32>
    %c3 = arith.constant 3 : index
    %c0_28 = arith.constant 0 : index
    %c0_29 = arith.constant 0 : index
    %26 = vector.load %arg4[%c3, %c0_28, %c0_29] : memref<9x16x16xbf16, #tpu.memory_space<vmem>>, vector<1x16x16xbf16>
    %27 = vector.shape_cast %26 : vector<1x16x16xbf16> to vector<16x16xbf16>
    %28 = vector.extract_strided_slice %1 {offsets = [0, 18], sizes = [16, 384], strides = [1, 1]} : vector<16x422xbf16> to vector<16x384xbf16>
    %cst_30 = arith.constant dense<0.000000e+00> : vector<16x384xf32>
    %29 = tpu.matmul %27, %28, %cst_30 {dimension_numbers = #tpu.dot_dimension_numbers<[1], [0], [0], [1], [0, 0, 1, 1], [], []>} : vector<16x16xbf16>, vector<16x384xbf16>, vector<16x384xf32> -> vector<16x384xf32>
    %30 = arith.addf %25, %29 : vector<16x384xf32>
    %c0_31 = arith.constant 0 : index
    %c0_32 = arith.constant 0 : index
    %31 = vector.load %arg9[%c0_31, %c0_32] : memref<16x384xf32, #tpu.memory_space<vmem>>, vector<16x384xf32>
    tpu.vector_store %arg9[%c0_31, %c0_32], %30 {strides = array<i32>} : memref<16x384xf32, #tpu.memory_space<vmem>>, vector<16x384xf32>,
    %c0_33 = arith.constant 0 : index
    %c0_34 = arith.constant 0 : index
    %32 = vector.load %arg9[%c0_33, %c0_34] : memref<16x384xf32, #tpu.memory_space<vmem>>, vector<16x384xf32>
    %c4 = arith.constant 4 : index
    %c0_35 = arith.constant 0 : index
    %c0_36 = arith.constant 0 : index
    %33 = vector.load %arg4[%c4, %c0_35, %c0_36] : memref<9x16x16xbf16, #tpu.memory_space<vmem>>, vector<1x16x16xbf16>
    %34 = vector.shape_cast %33 : vector<1x16x16xbf16> to vector<16x16xbf16>
    %35 = vector.extract_strided_slice %1 {offsets = [0, 19], sizes = [16, 384], strides = [1, 1]} : vector<16x422xbf16> to vector<16x384xbf16>
    %cst_37 = arith.constant dense<0.000000e+00> : vector<16x384xf32>
    %36 = tpu.matmul %34, %35, %cst_37 {dimension_numbers = #tpu.dot_dimension_numbers<[1], [0], [0], [1], [0, 0, 1, 1], [], []>} : vector<16x16xbf16>, vector<16x384xbf16>, vector<16x384xf32> -> vector<16x384xf32>
    %37 = arith.addf %32, %36 : vector<16x384xf32>
    %c0_38 = arith.constant 0 : index
    %c0_39 = arith.constant 0 : index
    %38 = vector.load %arg9[%c0_38, %c0_39] : memref<16x384xf32, #tpu.memory_space<vmem>>, vector<16x384xf32>
    tpu.vector_store %arg9[%c0_38, %c0_39], %37 {strides = array<i32>} : memref<16x384xf32, #tpu.memory_space<vmem>>, vector<16x384xf32>,
    %c0_40 = arith.constant 0 : index
    %c0_41 = arith.constant 0 : index
    %39 = vector.load %arg9[%c0_40, %c0_41] : memref<16x384xf32, #tpu.memory_space<vmem>>, vector<16x384xf32>
    %c5 = arith.constant 5 : index
    %c0_42 = arith.constant 0 : index
    %c0_43 = arith.constant 0 : index
    %40 = vector.load %arg4[%c5, %c0_42, %c0_43] : memref<9x16x16xbf16, #tpu.memory_space<vmem>>, vector<1x16x16xbf16>
    %41 = vector.shape_cast %40 : vector<1x16x16xbf16> to vector<16x16xbf16>
    %42 = vector.extract_strided_slice %1 {offsets = [0, 20], sizes = [16, 384], strides = [1, 1]} : vector<16x422xbf16> to vector<16x384xbf16>
    %cst_44 = arith.constant dense<0.000000e+00> : vector<16x384xf32>
    %43 = tpu.matmul %41, %42, %cst_44 {dimension_numbers = #tpu.dot_dimension_numbers<[1], [0], [0], [1], [0, 0, 1, 1], [], []>} : vector<16x16xbf16>, vector<16x384xbf16>, vector<16x384xf32> -> vector<16x384xf32>
    %44 = arith.addf %39, %43 : vector<16x384xf32>
    %c0_45 = arith.constant 0 : index
    %c0_46 = arith.constant 0 : index
    %45 = vector.load %arg9[%c0_45, %c0_46] : memref<16x384xf32, #tpu.memory_space<vmem>>, vector<16x384xf32>
    tpu.vector_store %arg9[%c0_45, %c0_46], %44 {strides = array<i32>} : memref<16x384xf32, #tpu.memory_space<vmem>>, vector<16x384xf32>,
    %c0_47 = arith.constant 0 : index
    %c0_48 = arith.constant 0 : index
    %46 = vector.load %arg9[%c0_47, %c0_48] : memref<16x384xf32, #tpu.memory_space<vmem>>, vector<16x384xf32>
    %c6 = arith.constant 6 : index
    %c0_49 = arith.constant 0 : index
    %c0_50 = arith.constant 0 : index
    %47 = vector.load %arg4[%c6, %c0_49, %c0_50] : memref<9x16x16xbf16, #tpu.memory_space<vmem>>, vector<1x16x16xbf16>
    %48 = vector.shape_cast %47 : vector<1x16x16xbf16> to vector<16x16xbf16>
    %49 = vector.extract_strided_slice %1 {offsets = [0, 36], sizes = [16, 384], strides = [1, 1]} : vector<16x422xbf16> to vector<16x384xbf16>
    %cst_51 = arith.constant dense<0.000000e+00> : vector<16x384xf32>
    %50 = tpu.matmul %48, %49, %cst_51 {dimension_numbers = #tpu.dot_dimension_numbers<[1], [0], [0], [1], [0, 0, 1, 1], [], []>} : vector<16x16xbf16>, vector<16x384xbf16>, vector<16x384xf32> -> vector<16x384xf32>
    %51 = arith.addf %46, %50 : vector<16x384xf32>
    %c0_52 = arith.constant 0 : index
    %c0_53 = arith.constant 0 : index
    %52 = vector.load %arg9[%c0_52, %c0_53] : memref<16x384xf32, #tpu.memory_space<vmem>>, vector<16x384xf32>
    tpu.vector_store %arg9[%c0_52, %c0_53], %51 {strides = array<i32>} : memref<16x384xf32, #tpu.memory_space<vmem>>, vector<16x384xf32>,
    %c0_54 = arith.constant 0 : index
    %c0_55 = arith.constant 0 : index
    %53 = vector.load %arg9[%c0_54, %c0_55] : memref<16x384xf32, #tpu.memory_space<vmem>>, vector<16x384xf32>
    %c7 = arith.constant 7 : index
    %c0_56 = arith.constant 0 : index
    %c0_57 = arith.constant 0 : index
    %54 = vector.load %arg4[%c7, %c0_56, %c0_57] : memref<9x16x16xbf16, #tpu.memory_space<vmem>>, vector<1x16x16xbf16>
    %55 = vector.shape_cast %54 : vector<1x16x16xbf16> to vector<16x16xbf16>
    %56 = vector.extract_strided_slice %1 {offsets = [0, 37], sizes = [16, 384], strides = [1, 1]} : vector<16x422xbf16> to vector<16x384xbf16>
    %cst_58 = arith.constant dense<0.000000e+00> : vector<16x384xf32>
    %57 = tpu.matmul %55, %56, %cst_58 {dimension_numbers = #tpu.dot_dimension_numbers<[1], [0], [0], [1], [0, 0, 1, 1], [], []>} : vector<16x16xbf16>, vector<16x384xbf16>, vector<16x384xf32> -> vector<16x384xf32>
    %58 = arith.addf %53, %57 : vector<16x384xf32>
    %c0_59 = arith.constant 0 : index
    %c0_60 = arith.constant 0 : index
    %59 = vector.load %arg9[%c0_59, %c0_60] : memref<16x384xf32, #tpu.memory_space<vmem>>, vector<16x384xf32>
    tpu.vector_store %arg9[%c0_59, %c0_60], %58 {strides = array<i32>} : memref<16x384xf32, #tpu.memory_space<vmem>>, vector<16x384xf32>,
    %c0_61 = arith.constant 0 : index
    %c0_62 = arith.constant 0 : index
    %60 = vector.load %arg9[%c0_61, %c0_62] : memref<16x384xf32, #tpu.memory_space<vmem>>, vector<16x384xf32>
    %c8 = arith.constant 8 : index
    %c0_63 = arith.constant 0 : index
    %c0_64 = arith.constant 0 : index
    %61 = vector.load %arg4[%c8, %c0_63, %c0_64] : memref<9x16x16xbf16, #tpu.memory_space<vmem>>, vector<1x16x16xbf16>
    %62 = vector.shape_cast %61 : vector<1x16x16xbf16> to vector<16x16xbf16>
    %63 = vector.extract_strided_slice %1 {offsets = [0, 38], sizes = [16, 384], strides = [1, 1]} : vector<16x422xbf16> to vector<16x384xbf16>
    %cst_65 = arith.constant dense<0.000000e+00> : vector<16x384xf32>
    %64 = tpu.matmul %62, %63, %cst_65 {dimension_numbers = #tpu.dot_dimension_numbers<[1], [0], [0], [1], [0, 0, 1, 1], [], []>} : vector<16x16xbf16>, vector<16x384xbf16>, vector<16x384xf32> -> vector<16x384xf32>
    %65 = arith.addf %60, %64 : vector<16x384xf32>
    %c0_66 = arith.constant 0 : index
    %c0_67 = arith.constant 0 : index
    %66 = vector.load %arg9[%c0_66, %c0_67] : memref<16x384xf32, #tpu.memory_space<vmem>>, vector<16x384xf32>
    tpu.vector_store %arg9[%c0_66, %c0_67], %65 {strides = array<i32>} : memref<16x384xf32, #tpu.memory_space<vmem>>, vector<16x384xf32>,
    %c0_68 = arith.constant 0 : index
    %c0_69 = arith.constant 0 : index
    %67 = vector.load %arg9[%c0_68, %c0_69] : memref<16x384xf32, #tpu.memory_space<vmem>>, vector<16x384xf32>
    %68 = vector.extract_strided_slice %67 {offsets = [0, 0], sizes = [8, 384], strides = [1, 1]} : vector<16x384xf32> to vector<8x384xf32>
    %69 = vector.extract_strided_slice %67 {offsets = [8, 0], sizes = [8, 384], strides = [1, 1]} : vector<16x384xf32> to vector<8x384xf32>
    %c0_70 = arith.constant 0 : index
    %c0_71 = arith.constant 0 : index
    %c0_72 = arith.constant 0 : index
    %70 = vector.load %arg2[%c0_70, %c0_71, %c0_72] : memref<1x8x1xf32, #tpu.memory_space<vmem>>, vector<1x8x1xf32>
    %71 = vector.shape_cast %70 : vector<1x8x1xf32> to vector<8x1xf32>
    %72 = vector.broadcast %71 : vector<8x1xf32> to vector<8x384xf32>
    %73 = arith.mulf %68, %72 : vector<8x384xf32>
    %74 = arith.addf %69, %73 : vector<8x384xf32>
    %c0_73 = arith.constant 0 : index
    %c0_74 = arith.constant 0 : index
    %c0_75 = arith.constant 0 : index
    %75 = vector.load %arg3[%c0_73, %c0_74, %c0_75] : memref<1x8x1xf32, #tpu.memory_space<vmem>>, vector<1x8x1xf32>
    %76 = vector.shape_cast %75 : vector<1x8x1xf32> to vector<8x1xf32>
    %77 = vector.broadcast %76 : vector<8x1xf32> to vector<8x384xf32>
    %78 = arith.addf %74, %77 : vector<8x384xf32>
    %c0_76 = arith.constant 0 : index
    %c0_77 = arith.constant 0 : index
    %79 = vector.load %arg7[%c0_76, %c0_77] : memref<1x384xf32, #tpu.memory_space<vmem>>, vector<1x384xf32>
    %80 = vector.broadcast %79 : vector<1x384xf32> to vector<8x384xf32>
    %81 = arith.mulf %78, %80 : vector<8x384xf32>
    %82 = vector.shape_cast %81 : vector<8x384xf32> to vector<1x8x384xf32>
    %cst_78 = arith.constant dense<0.000000e+00> : vector<1xf32>
    %83 = vector.multi_reduction <add>, %82, %cst_78 [1, 2] : vector<1x8x384xf32> to vector<1xf32>
    %84 = vector.shape_cast %83 : vector<1xf32> to vector<1x1x1xf32>
    %85 = vector.extract %84[0, 0, 0] : f32 from vector<1x1x1xf32>
    %86 = vector.broadcast %85 : f32 to vector<1x1xf32>
    %cst_79 = arith.constant 2.048000e+03 : f32
    %87 = vector.broadcast %cst_79 : f32 to vector<1x1xf32>
    %88 = arith.divf %86, %87 : vector<1x1xf32>
    %89 = vector.broadcast %88 : vector<1x1xf32> to vector<8x384xf32>
    %90 = arith.subf %78, %89 : vector<8x384xf32>
    %91 = vector.broadcast %79 : vector<1x384xf32> to vector<8x384xf32>
    %92 = arith.mulf %90, %91 : vector<8x384xf32>
    %93 = arith.mulf %92, %92 : vector<8x384xf32>
    %94 = vector.shape_cast %93 : vector<8x384xf32> to vector<1x8x384xf32>
    %cst_80 = arith.constant dense<0.000000e+00> : vector<1xf32>
    %95 = vector.multi_reduction <add>, %94, %cst_80 [1, 2] : vector<1x8x384xf32> to vector<1xf32>
    %96 = vector.shape_cast %95 : vector<1xf32> to vector<1x1x1xf32>
    %97 = vector.extract %96[0, 0, 0] : f32 from vector<1x1x1xf32>
    %98 = vector.broadcast %97 : f32 to vector<1x1xf32>
    %cst_81 = arith.constant 2.048000e+03 : f32
    %99 = vector.broadcast %cst_81 : f32 to vector<1x1xf32>
    %100 = arith.divf %98, %99 : vector<1x1xf32>
    %101 = vector.broadcast %88 : vector<1x1xf32> to vector<8x384xf32>
    %102 = arith.subf %78, %101 : vector<8x384xf32>
    %cst_82 = arith.constant 9.99999974E-6 : f32
    %103 = vector.broadcast %cst_82 : f32 to vector<1x1xf32>
    %104 = arith.addf %100, %103 : vector<1x1xf32>
    %105 = math.rsqrt %104 : vector<1x1xf32>
    %106 = vector.broadcast %105 : vector<1x1xf32> to vector<8x384xf32>
    %107 = arith.mulf %102, %106 : vector<8x384xf32>
    %c0_83 = arith.constant 0 : index
    %c0_84 = arith.constant 0 : index
    %108 = vector.load %arg5[%c0_83, %c0_84] : memref<8x384xf32, #tpu.memory_space<vmem>>, vector<8x384xf32>
    %109 = arith.mulf %107, %108 : vector<8x384xf32>
    %c0_85 = arith.constant 0 : index
    %c0_86 = arith.constant 0 : index
    %110 = vector.load %arg6[%c0_85, %c0_86] : memref<8x384xf32, #tpu.memory_space<vmem>>, vector<8x384xf32>
    %111 = arith.addf %109, %110 : vector<8x384xf32>
    %cst_87 = arith.constant 0.000000e+00 : f32
    %112 = vector.broadcast %cst_87 : f32 to vector<8x384xf32>
    %113 = arith.maximumf %111, %112 : vector<8x384xf32>
    %114 = arith.truncf %113 : vector<8x384xf32> to vector<8x384xbf16>
    %c0_88 = arith.constant 0 : index
    %c0_89 = arith.constant 0 : index
    %c0_90 = arith.constant 0 : index
    %115 = vector.load %arg8[%c0_88, %c0_89, %c0_90] : memref<1x8x384xbf16, #tpu.memory_space<vmem>>, vector<1x8x384xbf16>
    %116 = vector.shape_cast %115 : vector<1x8x384xbf16> to vector<8x384xbf16>
    %117 = vector.shape_cast %114 : vector<8x384xbf16> to vector<1x8x384xbf16>
    tpu.vector_store %arg8[%c0_88, %c0_89, %c0_90], %117 {strides = array<i32>} : memref<1x8x384xbf16, #tpu.memory_space<vmem>>, vector<1x8x384xbf16>,
    return
  }
  func.func @transform_0(%arg0: i32) -> (i32, i32, i32) {
    %c0_i32 = arith.constant 0 : i32
    %c0_i32_0 = arith.constant 0 : i32
    %c0_i32_1 = arith.constant 0 : i32
    return %arg0, %c0_i32, %c0_i32_0 : i32, i32, i32
  }
  func.func @transform_1(%arg0: i32) -> (i32, i32, i32) {
    %c0_i32 = arith.constant 0 : i32
    %c0_i32_0 = arith.constant 0 : i32
    %c0_i32_1 = arith.constant 0 : i32
    return %arg0, %c0_i32, %c0_i32_0 : i32, i32, i32
  }
  func.func @transform_2(%arg0: i32) -> (i32, i32, i32) {
    %c0_i32 = arith.constant 0 : i32
    %c0_i32_0 = arith.constant 0 : i32
    %c0_i32_1 = arith.constant 0 : i32
    return %arg0, %c0_i32, %c0_i32_0 : i32, i32, i32
  }
  func.func @transform_3(%arg0: i32) -> (i32, i32, i32) {
    %c0_i32 = arith.constant 0 : i32
    %c0_i32_0 = arith.constant 0 : i32
    %c0_i32_1 = arith.constant 0 : i32
    %c0_i32_2 = arith.constant 0 : i32
    return %c0_i32, %c0_i32_0, %c0_i32_1 : i32, i32, i32
  }
  func.func @transform_4(%arg0: i32) -> (i32, i32) {
    %c0_i32 = arith.constant 0 : i32
    %c0_i32_0 = arith.constant 0 : i32
    %c0_i32_1 = arith.constant 0 : i32
    return %c0_i32, %c0_i32_0 : i32, i32
  }
  func.func @transform_5(%arg0: i32) -> (i32, i32) {
    %c0_i32 = arith.constant 0 : i32
    %c0_i32_0 = arith.constant 0 : i32
    %c0_i32_1 = arith.constant 0 : i32
    return %c0_i32, %c0_i32_0 : i32, i32
  }
  func.func @transform_6(%arg0: i32) -> (i32, i32) {
    %c0_i32 = arith.constant 0 : i32
    %c0_i32_0 = arith.constant 0 : i32
    %c0_i32_1 = arith.constant 0 : i32
    return %c0_i32, %c0_i32_0 : i32, i32
  }
  func.func @transform_7(%arg0: i32) -> (i32, i32, i32) {
    %c0_i32 = arith.constant 0 : i32
    %c0_i32_0 = arith.constant 0 : i32
    %c0_i32_1 = arith.constant 0 : i32
    return %arg0, %c0_i32, %c0_i32_0 : i32, i32, i32
  }
}

</mosaic_0001>

<llo_original>
// kernel: unet_block_pallas.1
$region0: #{unet_block_pallas.1}
  #allocation0 [shape = 'u32[]', space=smem, size = 0x4, offset = 0x4, fixed_abs, tag = 'smem constant byte address 0x4 - core index']
  #allocation1 [shape = 'u32[144,128]{1,0:T(1,128)}', space=vmem, size = 0x12000, scoped, tag = 'internal scratch']
  #allocation2 [shape = 'f32[16,384]{1,0:T(8,128)}', space=vmem, size = 0x6000, scoped, tag = 'scratch operand']
  %s0 = inlined_call_operand.vmem [shape: bf16[2,16,422], index: 0, kind: input, shape index: {}]
  %s1 = inlined_call_operand.vmem [shape: f32[2,8,1], index: 1, kind: input, shape index: {}]
  %s2 = inlined_call_operand.vmem [shape: f32[2,8,1], index: 2, kind: input, shape index: {}]
  %s3 = inlined_call_operand.vmem [shape: bf16[9,16,16], index: 3, kind: input, shape index: {}]
  %s4 = inlined_call_operand.vmem [shape: f32[8,384], index: 4, kind: input, shape index: {}]
  %s5 = inlined_call_operand.vmem [shape: f32[8,384], index: 5, kind: input, shape index: {}]
  %s6 = inlined_call_operand.vmem [shape: f32[1,384], index: 6, kind: input, shape index: {}]
  %s7 = inlined_call_operand.hbm [shape: bf16[2,8,384], index: 7, kind: output, shape index: {}]
  %s8 = sld [smem:[#allocation0]]
  $region61: #{unet_block_pallas.1} parent=0
    _
  %s10 = ssub.s32 1, %s8
  %s11 = scalar_select 0, %s10, %s8
  $region1: #{unet_block_pallas.1} parent=0
    #allocation3 [shape = 'u8[12288]{0}', space=vmem, size = 0x3000, scoped, tag = 'output window, operand 0']
    #allocation4 [shape = 's32[2]{0}', space=sflag, size = 0x8, scoped, tag = 'scoped memory for unet_block_pallas.1']
    %12 = vsyncpa [#allocation4], 0
    %s13 = scalar_lea.sflag [#allocation4], 1
    %14 = vsyncpa %s13, 0
    loop: start=0, step=1, limit=4
    $region2: #{unet_block_pallas.1} parent=1 // loop_pre_header
      _
    $region3: #{unet_block_pallas.1} parent=1 // loop_header
      %s16 = sphi 0, %s20
      %p17 = scmp.ge.s32.totalorder %s16, 4
      %s26 = sphi 0, %s28
      %s29 = sphi 0, %s26
      %s30 = sphi 0, %s29
      %s46 = sphi 0, %s30
      %s52 = sphi 0, %s54
      %s55 = sphi 0, %s52
      %s56 = sphi 0, %s55
      %s72 = sphi 0, %s56
      %s78 = sphi 0, %s80
      %s81 = sphi 0, %s78
      %s82 = sphi 0, %s81
      %s98 = sphi 0, %s82
      %s102 = sphi 0, %s102
      %s104 = sphi 0, %s102
      %s105 = sphi 0, %s104
      %s119 = sphi 0, %s105
      %s123 = sphi 0, %s123
      %s125 = sphi 0, %s123
      %s126 = sphi 0, %s125
      %s140 = sphi 0, %s126
      %s144 = sphi 0, %s144
      %s146 = sphi 0, %s144
      %s147 = sphi 0, %s146
      %s161 = sphi 0, %s147
      %s165 = sphi 0, %s165
      %s167 = sphi 0, %s165
      %s168 = sphi 0, %s167
      %s182 = sphi 0, %s168
      %s188 = sphi 0, %s190
      %s191 = sphi 0, %s188
      %s192 = sphi 0, %s191
      %s208 = sphi 0, %s192
    $region4: #{unet_block_pallas.1} parent=1 // loop_header_branch
      %19 = sbr.rel (%p17) target = $region8
    $region5: #{unet_block_pallas.1} parent=1 // loop_body
      %s21 = ssub.s32 %s16, 1
      %s22 = ssub.s32 %s16, 2
      %s23 = sadd.s32 %s16, 1
      %s24 = ssub.s32 %s16, %s23
      %p25 = scmp.eq.s32.totalorder %s24, 0
      %s27 = sadd.s32 %s26, 1
      %s28 = scalar_select %p25, %s26, %s27
      %p31 = pneg %p25
      %p32 = scmp.eq.s32.totalorder %s16, 1
      %p33 = por %p31, %p32
      %p34 = scmp.ne.s32.totalorder %s26, %s29
      %p35 = scmp.eq.s32.totalorder %s16, 0
      %p36 = por %p34, %p35
      %p37 = scmp.ne.s32.totalorder %s26, %s29
      %p38 = scmp.eq.s32.totalorder %s21, 1
      %p39 = por %p37, %p38
      %p40 = scmp.ne.s32.totalorder %s29, %s30
      %p41 = scmp.eq.s32.totalorder %s21, 0
      %p42 = por %p40, %p41
      %p43 = scmp.ne.s32.totalorder %s29, %s30
      %p44 = scmp.eq.s32.totalorder %s22, 1
      %p45 = por %p43, %p44
      %p47 = scmp.ne.s32.totalorder %s30, %s46
      %p48 = scmp.eq.s32.totalorder %s22, 0
      %p49 = por %p47, %p48
      %s50 = ssub.s32 %s16, %s23
      %p51 = scmp.eq.s32.totalorder %s50, 0
      %s53 = sadd.s32 %s52, 1
      %s54 = scalar_select %p51, %s52, %s53
      %p57 = pneg %p51
      %p58 = scmp.eq.s32.totalorder %s16, 1
      %p59 = por %p57, %p58
      %p60 = scmp.ne.s32.totalorder %s52, %s55
      %p61 = scmp.eq.s32.totalorder %s16, 0
      %p62 = por %p60, %p61
      %p63 = scmp.ne.s32.totalorder %s52, %s55
      %p64 = scmp.eq.s32.totalorder %s21, 1
      %p65 = por %p63, %p64
      %p66 = scmp.ne.s32.totalorder %s55, %s56
      %p67 = scmp.eq.s32.totalorder %s21, 0
      %p68 = por %p66, %p67
      %p69 = scmp.ne.s32.totalorder %s55, %s56
      %p70 = scmp.eq.s32.totalorder %s22, 1
      %p71 = por %p69, %p70
      %p73 = scmp.ne.s32.totalorder %s56, %s72
      %p74 = scmp.eq.s32.totalorder %s22, 0
      %p75 = por %p73, %p74
      %s76 = ssub.s32 %s16, %s23
      %p77 = scmp.eq.s32.totalorder %s76, 0
      %s79 = sadd.s32 %s78, 1
      %s80 = scalar_select %p77, %s78, %s79
      %p83 = pneg %p77
      %p84 = scmp.eq.s32.totalorder %s16, 1
      %p85 = por %p83, %p84
      %p86 = scmp.ne.s32.totalorder %s78, %s81
      %p87 = scmp.eq.s32.totalorder %s16, 0
      %p88 = por %p86, %p87
      %p89 = scmp.ne.s32.totalorder %s78, %s81
      %p90 = scmp.eq.s32.totalorder %s21, 1
      %p91 = por %p89, %p90
      %p92 = scmp.ne.s32.totalorder %s81, %s82
      %p93 = scmp.eq.s32.totalorder %s21, 0
      %p94 = por %p92, %p93
      %p95 = scmp.ne.s32.totalorder %s81, %s82
      %p96 = scmp.eq.s32.totalorder %s22, 1
      %p97 = por %p95, %p96
      %p99 = scmp.ne.s32.totalorder %s82, %s98
      %p100 = scmp.eq.s32.totalorder %s22, 0
      %p101 = por %p99, %p100
      %s103 = sadd.s32 %s102, 1
      %p106 = scmp.eq.s32.totalorder %s16, 1
      %p107 = scmp.ne.s32.totalorder %s102, %s104
      %p108 = scmp.eq.s32.totalorder %s16, 0
      %p109 = por %p107, %p108
      %p110 = scmp.ne.s32.totalorder %s102, %s104
      %p111 = scmp.eq.s32.totalorder %s21, 1
      %p112 = por %p110, %p111
      %p113 = scmp.ne.s32.totalorder %s104, %s105
      %p114 = scmp.eq.s32.totalorder %s21, 0
      %p115 = por %p113, %p114
      %p116 = scmp.ne.s32.totalorder %s104, %s105
      %p117 = scmp.eq.s32.totalorder %s22, 1
      %p118 = por %p116, %p117
      %p120 = scmp.ne.s32.totalorder %s105, %s119
      %p121 = scmp.eq.s32.totalorder %s22, 0
      %p122 = por %p120, %p121
      %s124 = sadd.s32 %s123, 1
      %p127 = scmp.eq.s32.totalorder %s16, 1
      %p128 = scmp.ne.s32.totalorder %s123, %s125
      %p129 = scmp.eq.s32.totalorder %s16, 0
      %p130 = por %p128, %p129
      %p131 = scmp.ne.s32.totalorder %s123, %s125
      %p132 = scmp.eq.s32.totalorder %s21, 1
      %p133 = por %p131, %p132
      %p134 = scmp.ne.s32.totalorder %s125, %s126
      %p135 = scmp.eq.s32.totalorder %s21, 0
      %p136 = por %p134, %p135
      %p137 = scmp.ne.s32.totalorder %s125, %s126
      %p138 = scmp.eq.s32.totalorder %s22, 1
      %p139 = por %p137, %p138
      %p141 = scmp.ne.s32.totalorder %s126, %s140
      %p142 = scmp.eq.s32.totalorder %s22, 0
      %p143 = por %p141, %p142
      %s145 = sadd.s32 %s144, 1
      %p148 = scmp.eq.s32.totalorder %s16, 1
      %p149 = scmp.ne.s32.totalorder %s144, %s146
      %p150 = scmp.eq.s32.totalorder %s16, 0
      %p151 = por %p149, %p150
      %p152 = scmp.ne.s32.totalorder %s144, %s146
      %p153 = scmp.eq.s32.totalorder %s21, 1
      %p154 = por %p152, %p153
      %p155 = scmp.ne.s32.totalorder %s146, %s147
      %p156 = scmp.eq.s32.totalorder %s21, 0
      %p157 = por %p155, %p156
      %p158 = scmp.ne.s32.totalorder %s146, %s147
      %p159 = scmp.eq.s32.totalorder %s22, 1
      %p160 = por %p158, %p159
      %p162 = scmp.ne.s32.totalorder %s147, %s161
      %p163 = scmp.eq.s32.totalorder %s22, 0
      %p164 = por %p162, %p163
      %s166 = sadd.s32 %s165, 1
      %p169 = scmp.eq.s32.totalorder %s16, 1
      %p170 = scmp.ne.s32.totalorder %s165, %s167
      %p171 = scmp.eq.s32.totalorder %s16, 0
      %p172 = por %p170, %p171
      %p173 = scmp.ne.s32.totalorder %s165, %s167
      %p174 = scmp.eq.s32.totalorder %s21, 1
      %p175 = por %p173, %p174
      %p176 = scmp.ne.s32.totalorder %s167, %s168
      %p177 = scmp.eq.s32.totalorder %s21, 0
      %p178 = por %p176, %p177
      %p179 = scmp.ne.s32.totalorder %s167, %s168
      %p180 = scmp.eq.s32.totalorder %s22, 1
      %p181 = por %p179, %p180
      %p183 = scmp.ne.s32.totalorder %s168, %s182
      %p184 = scmp.eq.s32.totalorder %s22, 0
      %p185 = por %p183, %p184
      %s186 = ssub.s32 %s16, %s23
      %p187 = scmp.eq.s32.totalorder %s186, 0
      %s189 = sadd.s32 %s188, 1
      %s190 = scalar_select %p187, %s188, %s189
      %p193 = pneg %p187
      %p194 = scmp.eq.s32.totalorder %s16, 1
      %p195 = por %p193, %p194
      %p196 = scmp.ne.s32.totalorder %s188, %s191
      %p197 = scmp.eq.s32.totalorder %s16, 0
      %p198 = por %p196, %p197
      %p199 = scmp.ne.s32.totalorder %s188, %s191
      %p200 = scmp.eq.s32.totalorder %s21, 1
      %p201 = por %p199, %p200
      %p202 = scmp.ne.s32.totalorder %s191, %s192
      %p203 = scmp.eq.s32.totalorder %s21, 0
      %p204 = por %p202, %p203
      %p205 = scmp.ne.s32.totalorder %s191, %s192
      %p206 = scmp.eq.s32.totalorder %s22, 1
      %p207 = por %p205, %p206
      %p209 = scmp.ne.s32.totalorder %s192, %s208
      %p210 = scmp.eq.s32.totalorder %s22, 0
      %p211 = por %p209, %p210
      %p212 = scmp.le.s32.totalorder 1, %s16
      %p213 = scmp.lt.s32.totalorder %s16, 3
      %p214 = pnand %p212, %p213
      %p215 = pneg %p214
      // Predicated region
      $region9: #{unet_block_pallas.1} parent=5 // pred_check
        _
      $region10: #{unet_block_pallas.1} parent=5 // pred_check_branch
        %217 = sbr.rel (%p214) target = $region12
      $region11: #{unet_block_pallas.1} parent=5 // pred_region
        %s218 = ssub.s32 %s16, 1
        // Predicated region
        $region13: #{unet_block_pallas.1} parent=11 // pred_check
          %p219 = pneg %p115
        $region14: #{unet_block_pallas.1} parent=11 // pred_check_branch
          %221 = sbr.rel (%p219) target = $region16
        $region15: #{unet_block_pallas.1} parent=11 // pred_region
          _
        $region16: #{unet_block_pallas.1} parent=11 // pred_fallthru
          _
        // Predicated region
        $region17: #{unet_block_pallas.1} parent=11 // pred_check
          %p222 = pneg %p136
        $region18: #{unet_block_pallas.1} parent=11 // pred_check_branch
          %224 = sbr.rel (%p222) target = $region20
        $region19: #{unet_block_pallas.1} parent=11 // pred_region
          _
        $region20: #{unet_block_pallas.1} parent=11 // pred_fallthru
          _
        // Predicated region
        $region21: #{unet_block_pallas.1} parent=11 // pred_check
          %p225 = pneg %p157
        $region22: #{unet_block_pallas.1} parent=11 // pred_check_branch
          %227 = sbr.rel (%p225) target = $region24
        $region23: #{unet_block_pallas.1} parent=11 // pred_region
          _
        $region24: #{unet_block_pallas.1} parent=11 // pred_fallthru
          _
        // Predicated region
        $region25: #{unet_block_pallas.1} parent=11 // pred_check
          %p228 = pneg %p178
        $region26: #{unet_block_pallas.1} parent=11 // pred_check_branch
          %230 = sbr.rel (%p228) target = $region28
        $region27: #{unet_block_pallas.1} parent=11 // pred_region
          _
        $region28: #{unet_block_pallas.1} parent=11 // pred_fallthru
          _
      $region12: #{unet_block_pallas.1} parent=5 // pred_fallthru
        _
      %p231 = scmp.lt.s32.totalorder %s16, 2
      // Predicated region
      $region29: #{unet_block_pallas.1} parent=5 // pred_check
        %p232 = pneg %p231
      $region30: #{unet_block_pallas.1} parent=5 // pred_check_branch
        %234 = sbr.rel (%p232) target = $region32
      $region31: #{unet_block_pallas.1} parent=5 // pred_region
        // Predicated region
        $region33: #{unet_block_pallas.1} parent=31 // pred_check
          %p235 = pneg %p36
        $region34: #{unet_block_pallas.1} parent=31 // pred_check_branch
          %237 = sbr.rel (%p235) target = $region36
        $region35: #{unet_block_pallas.1} parent=31 // pred_region
          %p238 = scmp.lt.s32.totalorder %s16, 1
          %s239 = scalar_select %p238, %s16, 1
          %s240 = smul.addr %s239, 8
          %s241 = smul.addr %s240, 4
          %s242 = scalar_lea.vmem %s0, %s241
        $region36: #{unet_block_pallas.1} parent=31 // pred_fallthru
          _
        // Predicated region
        $region37: #{unet_block_pallas.1} parent=31 // pred_check
          %p243 = pneg %p62
        $region38: #{unet_block_pallas.1} parent=31 // pred_check_branch
          %245 = sbr.rel (%p243) target = $region40
        $region39: #{unet_block_pallas.1} parent=31 // pred_region
          %p246 = scmp.lt.s32.totalorder %s16, 1
          %s247 = scalar_select %p246, %s16, 1
          %s248 = smul.addr %s247, 8
          %s249 = scalar_lea.vmem %s1, %s248
        $region40: #{unet_block_pallas.1} parent=31 // pred_fallthru
          _
        // Predicated region
        $region41: #{unet_block_pallas.1} parent=31 // pred_check
          %p250 = pneg %p88
        $region42: #{unet_block_pallas.1} parent=31 // pred_check_branch
          %252 = sbr.rel (%p250) target = $region44
        $region43: #{unet_block_pallas.1} parent=31 // pred_region
          %p253 = scmp.lt.s32.totalorder %s16, 1
          %s254 = scalar_select %p253, %s16, 1
          %s255 = smul.addr %s254, 8
          %s256 = scalar_lea.vmem %s2, %s255
        $region44: #{unet_block_pallas.1} parent=31 // pred_fallthru
          _
      $region32: #{unet_block_pallas.1} parent=5 // pred_fallthru
        _
      %p257 = scmp.le.s32.totalorder 1, %s16
      %p258 = scmp.lt.s32.totalorder %s16, 3
      %p259 = pnand %p257, %p258
      %p260 = pneg %p259
      // Predicated region
      $region45: #{unet_block_pallas.1} parent=5 // pred_check
        _
      $region46: #{unet_block_pallas.1} parent=5 // pred_check_branch
        %262 = sbr.rel (%p259) target = $region48
      $region47: #{unet_block_pallas.1} parent=5 // pred_region
        %s263 = ssub.s32 %s16, 1
        %p264 = scmp.lt.s32.totalorder %s21, 1
        %s265 = scalar_select %p264, %s21, 1
        %s266 = smul.addr %s265, 8
        %s267 = smul.addr %s266, 4
        %s268 = scalar_lea.vmem %s0, %s267
        %p269 = pneg %p42
        %p270 = pneg %p39
        %p271 = scmp.lt.s32.totalorder %s21, 1
        %s272 = scalar_select %p271, %s21, 1
        %s273 = smul.addr %s272, 8
        %s274 = scalar_lea.vmem %s1, %s273
        %p275 = pneg %p68
        %p276 = pneg %p65
        %p277 = scmp.lt.s32.totalorder %s21, 1
        %s278 = scalar_select %p277, %s21, 1
        %s279 = smul.addr %s278, 8
        %s280 = scalar_lea.vmem %s2, %s279
        %p281 = pneg %p94
        %p282 = pneg %p91
        %p283 = pneg %p115
        %p284 = pneg %p112
        %p285 = pneg %p136
        %p286 = pneg %p133
        %p287 = pneg %p157
        %p288 = pneg %p154
        %p289 = pneg %p178
        %p290 = pneg %p175
        %p291 = pneg %p204
        %p292 = pneg %p201
        %s293 = sand.u32 %s191, 1
        %s294 = scalar_lea.sflag [#allocation4], %s293
        %s295 = sand.u32 %s191, 1
        %s296 = smul.addr %s295, 12
        %s297 = scalar_lea.vmem [#allocation3], %s296
        %p298 = scmp.lt.s32.totalorder %s21, 1
        %s299 = scalar_select %p298, %s21, 1
        %s300 = smul.addr %s299, 8
        %s301 = smul.addr %s300, 4
        %s302 = scalar_lea.vmem %s0, %s301
        %p303 = scmp.lt.s32.totalorder %s21, 1
        %s304 = scalar_select %p303, %s21, 1
        %s305 = smul.addr %s304, 8
        %s306 = scalar_lea.vmem %s1, %s305
        %p307 = scmp.lt.s32.totalorder %s21, 1
        %s308 = scalar_select %p307, %s21, 1
        %s309 = smul.addr %s308, 8
        %s310 = scalar_lea.vmem %s2, %s309
        %v312 = vld [vmem:[%s302] sm:$0xff]
        %v313 = vld [vmem:[%s302 + $0x8] sm:$0xff]
        %v314 = vld [vmem:[%s302 + $0x10] sm:$0xff]
        %v315 = vld [vmem:[%s302 + $0x18] sm:$0xff]
        %316 = vst [vmem:[#allocation2] sm:$0xff] 0.0
        %317 = vst [vmem:[#allocation2 + $0x8] sm:$0xff] 0.0
        %318 = vst [vmem:[#allocation2 + $0x10] sm:$0xff] 0.0
        %319 = vst [vmem:[#allocation2 + $0x18] sm:$0xff] 0.0
        %320 = vst [vmem:[#allocation2 + $0x20] sm:$0xff] 0.0
        %321 = vst [vmem:[#allocation2 + $0x28] sm:$0xff] 0.0
        %v322 = vld [vmem:[#allocation2] sm:$0xff]
        %v323 = vld [vmem:[#allocation2 + $0x8] sm:$0xff]
        %v324 = vld [vmem:[#allocation2 + $0x10] sm:$0xff]
        %v325 = vld [vmem:[#allocation2 + $0x18] sm:$0xff]
        %v326 = vld [vmem:[#allocation2 + $0x20] sm:$0xff]
        %v327 = vld [vmem:[#allocation2 + $0x28] sm:$0xff]
        %v328 = vld [vmem:[%s3] sm:$0xf]
        %v329 = vld [vmem:[%s3 + $0x4] sm:$0xf]
        %v332 = vunpack.c.l.b16 %v328
        %v333 = vunpack.c.l.b16 %v329
        %v334 = vpack.c.b16 %v333, %v332
        %v339 = vunpack.c.l.b16 %v312
        %v340 = vunpack.c.h.b16 %v312
        %v341 = vunpack.c.l.b16 %v313
        %v342 = vunpack.c.l.b16 %v314
        %v343 = vunpack.c.h.b16 %v314
        %v344 = vunpack.c.l.b16 %v315
        %v345 = vpack.c.b16 %v342, %v339
        %v346 = vpack.c.b16 %v343, %v340
        %v347 = vpack.c.b16 %v344, %v341
        %vm351 = vcmask 130048
        %v353 = vsel %vm351, %v334, 0
        %355 = vmatprep.subr.bf16.mxu0 %v346
        %356 = vmatpush1.bf16.msra.mxu0 %v345
        %357 = vmatprep.subr.bf16.mxu0 0
        %358 = vmatpush1.bf16.msra.mxu0 0
        %359 = vmatprep.subr.bf16.mxu0 0
        %360 = vmatpush1.bf16.msra.mxu0 0
        %361 = vmatprep.subr.bf16.mxu0 0
        %362 = vmatpush1.bf16.msra.mxu0 0
        %363 = vmatprep.subr.bf16.mxu0 0
        %364 = vmatpush1.bf16.msra.mxu0 0
        %365 = vmatprep.subr.bf16.mxu0 0
        %366 = vmatpush1.bf16.msra.mxu0 0
        %367 = vmatprep.subr.bf16.mxu0 0
        %368 = vmatpush1.bf16.msra.mxu0 0
        %369 = vmatprep.subr.bf16.mxu0 0
        %370 = vmatpush1.bf16.msra.mxu0 0
        %371 = vmatprep.subr.bf16.mxu0 0
        %372 = vmatpush1.bf16.msra.mxu0 0
        %373 = vmatprep.subr.bf16.mxu0 0
        %374 = vmatpush1.bf16.msra.mxu0 0
        %375 = vmatprep.subr.bf16.mxu0 0
        %376 = vmatpush1.bf16.msra.mxu0 0
        %377 = vmatprep.subr.bf16.mxu0 0
        %378 = vmatpush1.bf16.msra.mxu0 0
        %379 = vmatprep.subr.bf16.mxu0 0
        %380 = vmatpush1.bf16.msra.mxu0 0
        %381 = vmatprep.subr.bf16.mxu0 0
        %382 = vmatpush1.bf16.msra.mxu0 0
        %383 = vmatprep.subr.bf16.mxu0 0
        %384 = vmatpush1.bf16.msra.mxu0 0
        %385 = vmatprep.subr.bf16.mxu0 0
        %386 = vmatpush1.bf16.msra.mxu0 0
        %387 = vmatprep.mubr.bf16.mxu0 0
        %388 = vmatmul.mubr.bf16.gmra.mrb[0].mxu0 %v353
        %v389 = vpop.f32.mrb[0].mxu0
        %v390 = vadd.f32 0.0, %v389
        %v391 = vpop.f32.mrb[0].mxu0
        %v392 = vadd.f32 0.0, %v391
        %v393 = vpop.f32.mrb[0].mxu0
        %v394 = vadd.f32 0.0, %v393
        %v395 = vpop.f32.mrb[0].mxu0
        %v396 = vadd.f32 0.0, %v395
        %397 = vdwg.mxu0
        %398 = vmatprep.subr.bf16.mxu0 0
        %399 = vmatpush1.bf16.msra.mxu0 %v347
        %400 = vmatprep.subr.bf16.mxu0 0
        %401 = vmatpush1.bf16.msra.mxu0 0
        %402 = vmatprep.subr.bf16.mxu0 0
        %403 = vmatpush1.bf16.msra.mxu0 0
        %404 = vmatprep.subr.bf16.mxu0 0
        %405 = vmatpush1.bf16.msra.mxu0 0
        %406 = vmatprep.subr.bf16.mxu0 0
        %407 = vmatpush1.bf16.msra.mxu0 0
        %408 = vmatprep.subr.bf16.mxu0 0
        %409 = vmatpush1.bf16.msra.mxu0 0
        %410 = vmatprep.subr.bf16.mxu0 0
        %411 = vmatpush1.bf16.msra.mxu0 0
        %412 = vmatprep.subr.bf16.mxu0 0
        %413 = vmatpush1.bf16.msra.mxu0 0
        %414 = vmatprep.subr.bf16.mxu0 0
        %415 = vmatpush1.bf16.msra.mxu0 0
        %416 = vmatprep.subr.bf16.mxu0 0
        %417 = vmatpush1.bf16.msra.mxu0 0
        %418 = vmatprep.subr.bf16.mxu0 0
        %419 = vmatpush1.bf16.msra.mxu0 0
        %420 = vmatprep.subr.bf16.mxu0 0
        %421 = vmatpush1.bf16.msra.mxu0 0
        %422 = vmatprep.subr.bf16.mxu0 0
        %423 = vmatpush1.bf16.msra.mxu0 0
        %424 = vmatprep.subr.bf16.mxu0 0
        %425 = vmatpush1.bf16.msra.mxu0 0
        %426 = vmatprep.subr.bf16.mxu0 0
        %427 = vmatpush1.bf16.msra.mxu0 0
        %428 = vmatprep.subr.bf16.mxu0 0
        %429 = vmatpush1.bf16.msra.mxu0 0
        %430 = vmatprep.mubr.bf16.mxu0 0
        %431 = vmatmul.mubr.bf16.gmra.mrb[0].mxu0 %v353
        %v432 = vpop.f32.mrb[0].mxu0
        %v433 = vadd.f32 0.0, %v432
        %v434 = vpop.f32.mrb[0].mxu0
        %v435 = vpop.f32.mrb[0].mxu0
        %v436 = vadd.f32 0.0, %v435
        %v437 = vpop.f32.mrb[0].mxu0
        %438 = vdwg.mxu0
        %v439 = vadd.f32 %v322, %v390
        %v440 = vadd.f32 %v323, %v392
        %v441 = vadd.f32 %v324, %v433
        %v442 = vadd.f32 %v325, %v394
        %v443 = vadd.f32 %v326, %v396
        %v444 = vadd.f32 %v327, %v436
        %445 = vst [vmem:[#allocation2] sm:$0xff] %v439
        %446 = vst [vmem:[#allocation2 + $0x8] sm:$0xff] %v440
        %447 = vst [vmem:[#allocation2 + $0x10] sm:$0xff] %v441
        %448 = vst [vmem:[#allocation2 + $0x18] sm:$0xff] %v442
        %449 = vst [vmem:[#allocation2 + $0x20] sm:$0xff] %v443
        %450 = vst [vmem:[#allocation2 + $0x28] sm:$0xff] %v444
        %v451 = vld [vmem:[#allocation2] sm:$0xff]
        %v452 = vld [vmem:[#allocation2 + $0x8] sm:$0xff]
        %v453 = vld [vmem:[#allocation2 + $0x10] sm:$0xff]
        %v454 = vld [vmem:[#allocation2 + $0x18] sm:$0xff]
        %v455 = vld [vmem:[#allocation2 + $0x20] sm:$0xff]
        %v456 = vld [vmem:[#allocation2 + $0x28] sm:$0xff]
        %s457 = scalar_lea.vmem %s3, 8
        %v458 = vld [vmem:[%s457] sm:$0xf]
        %v459 = vld [vmem:[%s457 + $0x4] sm:$0xf]
        %v462 = vunpack.c.l.b16 %v458
        %v463 = vunpack.c.l.b16 %v459
        %v464 = vpack.c.b16 %v463, %v462
        %v465 = vunpack.c.h.b16 %v313
        %v466 = vunpack.c.h.b16 %v315
        %v467 = vpack.c.b16 %v466, %v465
        %468 = vrot.lane.b32.xlu0 %v345, 127
        %v469 = vpop.permute.xlu0 %468
        %470 = vrot.lane.b32.xlu0 %v346, 127
        %v471 = vpop.permute.xlu0 %470
        %472 = vrot.lane.b32.xlu0 %v347, 127
        %v473 = vpop.permute.xlu0 %472
        %474 = vrot.lane.b32.xlu0 %v467, 127
        %v475 = vpop.permute.xlu0 %474
        %vm476 = vcmask 1039360
        %v477 = vsel %vm476, %v469, %v471
        %v478 = vsel %vm476, %v471, %v473
        %v479 = vsel %vm476, %v473, %v475
        %v484 = vsel %vm351, %v464, 0
        %486 = vmatprep.subr.bf16.mxu0 %v478
        %487 = vmatpush1.bf16.msra.mxu0 %v477
        %488 = vmatprep.subr.bf16.mxu0 0
        %489 = vmatpush1.bf16.msra.mxu0 0
        %490 = vmatprep.subr.bf16.mxu0 0
        %491 = vmatpush1.bf16.msra.mxu0 0
        %492 = vmatprep.subr.bf16.mxu0 0
        %493 = vmatpush1.bf16.msra.mxu0 0
        %494 = vmatprep.subr.bf16.mxu0 0
        %495 = vmatpush1.bf16.msra.mxu0 0
        %496 = vmatprep.subr.bf16.mxu0 0
        %497 = vmatpush1.bf16.msra.mxu0 0
        %498 = vmatprep.subr.bf16.mxu0 0
        %499 = vmatpush1.bf16.msra.mxu0 0
        %500 = vmatprep.subr.bf16.mxu0 0
        %501 = vmatpush1.bf16.msra.mxu0 0
        %502 = vmatprep.subr.bf16.mxu0 0
        %503 = vmatpush1.bf16.msra.mxu0 0
        %504 = vmatprep.subr.bf16.mxu0 0
        %505 = vmatpush1.bf16.msra.mxu0 0
        %506 = vmatprep.subr.bf16.mxu0 0
        %507 = vmatpush1.bf16.msra.mxu0 0
        %508 = vmatprep.subr.bf16.mxu0 0
        %509 = vmatpush1.bf16.msra.mxu0 0
        %510 = vmatprep.subr.bf16.mxu0 0
        %511 = vmatpush1.bf16.msra.mxu0 0
        %512 = vmatprep.subr.bf16.mxu0 0
        %513 = vmatpush1.bf16.msra.mxu0 0
        %514 = vmatprep.subr.bf16.mxu0 0
        %515 = vmatpush1.bf16.msra.mxu0 0
        %516 = vmatprep.subr.bf16.mxu0 0
        %517 = vmatpush1.bf16.msra.mxu0 0
        %518 = vmatprep.mubr.bf16.mxu0 0
        %519 = vmatmul.mubr.bf16.gmra.mrb[0].mxu0 %v484
        %v520 = vpop.f32.mrb[0].mxu0
        %v521 = vadd.f32 0.0, %v520
        %v522 = vpop.f32.mrb[0].mxu0
        %v523 = vadd.f32 0.0, %v522
        %v524 = vpop.f32.mrb[0].mxu0
        %v525 = vadd.f32 0.0, %v524
        %v526 = vpop.f32.mrb[0].mxu0
        %v527 = vadd.f32 0.0, %v526
        %528 = vdwg.mxu0
        %529 = vmatprep.subr.bf16.mxu0 0
        %530 = vmatpush1.bf16.msra.mxu0 %v479
        %531 = vmatprep.subr.bf16.mxu0 0
        %532 = vmatpush1.bf16.msra.mxu0 0
        %533 = vmatprep.subr.bf16.mxu0 0
        %534 = vmatpush1.bf16.msra.mxu0 0
        %535 = vmatprep.subr.bf16.mxu0 0
        %536 = vmatpush1.bf16.msra.mxu0 0
        %537 = vmatprep.subr.bf16.mxu0 0
        %538 = vmatpush1.bf16.msra.mxu0 0
        %539 = vmatprep.subr.bf16.mxu0 0
        %540 = vmatpush1.bf16.msra.mxu0 0
        %541 = vmatprep.subr.bf16.mxu0 0
        %542 = vmatpush1.bf16.msra.mxu0 0
        %543 = vmatprep.subr.bf16.mxu0 0
        %544 = vmatpush1.bf16.msra.mxu0 0
        %545 = vmatprep.subr.bf16.mxu0 0
        %546 = vmatpush1.bf16.msra.mxu0 0
        %547 = vmatprep.subr.bf16.mxu0 0
        %548 = vmatpush1.bf16.msra.mxu0 0
        %549 = vmatprep.subr.bf16.mxu0 0
        %550 = vmatpush1.bf16.msra.mxu0 0
        %551 = vmatprep.subr.bf16.mxu0 0
        %552 = vmatpush1.bf16.msra.mxu0 0
        %553 = vmatprep.subr.bf16.mxu0 0
        %554 = vmatpush1.bf16.msra.mxu0 0
        %555 = vmatprep.subr.bf16.mxu0 0
        %556 = vmatpush1.bf16.msra.mxu0 0
        %557 = vmatprep.subr.bf16.mxu0 0
        %558 = vmatpush1.bf16.msra.mxu0 0
        %559 = vmatprep.subr.bf16.mxu0 0
        %560 = vmatpush1.bf16.msra.mxu0 0
        %561 = vmatprep.mubr.bf16.mxu0 0
        %562 = vmatmul.mubr.bf16.gmra.mrb[0].mxu0 %v484
        %v563 = vpop.f32.mrb[0].mxu0
        %v564 = vadd.f32 0.0, %v563
        %v565 = vpop.f32.mrb[0].mxu0
        %v566 = vpop.f32.mrb[0].mxu0
        %v567 = vadd.f32 0.0, %v566
        %v568 = vpop.f32.mrb[0].mxu0
        %569 = vdwg.mxu0
        %v570 = vadd.f32 %v451, %v521
        %v571 = vadd.f32 %v452, %v523
        %v572 = vadd.f32 %v453, %v564
        %v573 = vadd.f32 %v454, %v525
        %v574 = vadd.f32 %v455, %v527
        %v575 = vadd.f32 %v456, %v567
        %576 = vst [vmem:[#allocation2] sm:$0xff] %v570
        %577 = vst [vmem:[#allocation2 + $0x8] sm:$0xff] %v571
        %578 = vst [vmem:[#allocation2 + $0x10] sm:$0xff] %v572
        %579 = vst [vmem:[#allocation2 + $0x18] sm:$0xff] %v573
        %580 = vst [vmem:[#allocation2 + $0x20] sm:$0xff] %v574
        %581 = vst [vmem:[#allocation2 + $0x28] sm:$0xff] %v575
        %v582 = vld [vmem:[#allocation2] sm:$0xff]
        %v583 = vld [vmem:[#allocation2 + $0x8] sm:$0xff]
        %v584 = vld [vmem:[#allocation2 + $0x10] sm:$0xff]
        %v585 = vld [vmem:[#allocation2 + $0x18] sm:$0xff]
        %v586 = vld [vmem:[#allocation2 + $0x20] sm:$0xff]
        %v587 = vld [vmem:[#allocation2 + $0x28] sm:$0xff]
        %s588 = scalar_lea.vmem %s3, 16
        %v589 = vld [vmem:[%s588] sm:$0xf]
        %v590 = vld [vmem:[%s588 + $0x4] sm:$0xf]
        %v593 = vunpack.c.l.b16 %v589
        %v594 = vunpack.c.l.b16 %v590
        %v595 = vpack.c.b16 %v594, %v593
        %596 = vrot.lane.b32.xlu0 %v345, 126
        %v597 = vpop.permute.xlu0 %596
        %598 = vrot.lane.b32.xlu0 %v346, 126
        %v599 = vpop.permute.xlu0 %598
        %600 = vrot.lane.b32.xlu0 %v347, 126
        %v601 = vpop.permute.xlu0 %600
        %602 = vrot.lane.b32.xlu0 %v467, 126
        %v603 = vpop.permute.xlu0 %602
        %vm604 = vcmask 1031168
        %v605 = vsel %vm604, %v597, %v599
        %v606 = vsel %vm604, %v599, %v601
        %v607 = vsel %vm604, %v601, %v603
        %v612 = vsel %vm351, %v595, 0
        %614 = vmatprep.subr.bf16.mxu0 %v606
        %615 = vmatpush1.bf16.msra.mxu0 %v605
        %616 = vmatprep.subr.bf16.mxu0 0
        %617 = vmatpush1.bf16.msra.mxu0 0
        %618 = vmatprep.subr.bf16.mxu0 0
        %619 = vmatpush1.bf16.msra.mxu0 0
        %620 = vmatprep.subr.bf16.mxu0 0
        %621 = vmatpush1.bf16.msra.mxu0 0
        %622 = vmatprep.subr.bf16.mxu0 0
        %623 = vmatpush1.bf16.msra.mxu0 0
        %624 = vmatprep.subr.bf16.mxu0 0
        %625 = vmatpush1.bf16.msra.mxu0 0
        %626 = vmatprep.subr.bf16.mxu0 0
        %627 = vmatpush1.bf16.msra.mxu0 0
        %628 = vmatprep.subr.bf16.mxu0 0
        %629 = vmatpush1.bf16.msra.mxu0 0
        %630 = vmatprep.subr.bf16.mxu0 0
        %631 = vmatpush1.bf16.msra.mxu0 0
        %632 = vmatprep.subr.bf16.mxu0 0
        %633 = vmatpush1.bf16.msra.mxu0 0
        %634 = vmatprep.subr.bf16.mxu0 0
        %635 = vmatpush1.bf16.msra.mxu0 0
        %636 = vmatprep.subr.bf16.mxu0 0
        %637 = vmatpush1.bf16.msra.mxu0 0
        %638 = vmatprep.subr.bf16.mxu0 0
        %639 = vmatpush1.bf16.msra.mxu0 0
        %640 = vmatprep.subr.bf16.mxu0 0
        %641 = vmatpush1.bf16.msra.mxu0 0
        %642 = vmatprep.subr.bf16.mxu0 0
        %643 = vmatpush1.bf16.msra.mxu0 0
        %644 = vmatprep.subr.bf16.mxu0 0
        %645 = vmatpush1.bf16.msra.mxu0 0
        %646 = vmatprep.mubr.bf16.mxu0 0
        %647 = vmatmul.mubr.bf16.gmra.mrb[0].mxu0 %v612
        %v648 = vpop.f32.mrb[0].mxu0
        %v649 = vadd.f32 0.0, %v648
        %v650 = vpop.f32.mrb[0].mxu0
        %v651 = vadd.f32 0.0, %v650
        %v652 = vpop.f32.mrb[0].mxu0
        %v653 = vadd.f32 0.0, %v652
        %v654 = vpop.f32.mrb[0].mxu0
        %v655 = vadd.f32 0.0, %v654
        %656 = vdwg.mxu0
        %657 = vmatprep.subr.bf16.mxu0 0
        %658 = vmatpush1.bf16.msra.mxu0 %v607
        %659 = vmatprep.subr.bf16.mxu0 0
        %660 = vmatpush1.bf16.msra.mxu0 0
        %661 = vmatprep.subr.bf16.mxu0 0
        %662 = vmatpush1.bf16.msra.mxu0 0
        %663 = vmatprep.subr.bf16.mxu0 0
        %664 = vmatpush1.bf16.msra.mxu0 0
        %665 = vmatprep.subr.bf16.mxu0 0
        %666 = vmatpush1.bf16.msra.mxu0 0
        %667 = vmatprep.subr.bf16.mxu0 0
        %668 = vmatpush1.bf16.msra.mxu0 0
        %669 = vmatprep.subr.bf16.mxu0 0
        %670 = vmatpush1.bf16.msra.mxu0 0
        %671 = vmatprep.subr.bf16.mxu0 0
        %672 = vmatpush1.bf16.msra.mxu0 0
        %673 = vmatprep.subr.bf16.mxu0 0
        %674 = vmatpush1.bf16.msra.mxu0 0
        %675 = vmatprep.subr.bf16.mxu0 0
        %676 = vmatpush1.bf16.msra.mxu0 0
        %677 = vmatprep.subr.bf16.mxu0 0
        %678 = vmatpush1.bf16.msra.mxu0 0
        %679 = vmatprep.subr.bf16.mxu0 0
        %680 = vmatpush1.bf16.msra.mxu0 0
        %681 = vmatprep.subr.bf16.mxu0 0
        %682 = vmatpush1.bf16.msra.mxu0 0
        %683 = vmatprep.subr.bf16.mxu0 0
        %684 = vmatpush1.bf16.msra.mxu0 0
        %685 = vmatprep.subr.bf16.mxu0 0
        %686 = vmatpush1.bf16.msra.mxu0 0
        %687 = vmatprep.subr.bf16.mxu0 0
        %688 = vmatpush1.bf16.msra.mxu0 0
        %689 = vmatprep.mubr.bf16.mxu0 0
        %690 = vmatmul.mubr.bf16.gmra.mrb[0].mxu0 %v612
        %v691 = vpop.f32.mrb[0].mxu0
        %v692 = vadd.f32 0.0, %v691
        %v693 = vpop.f32.mrb[0].mxu0
        %v694 = vpop.f32.mrb[0].mxu0
        %v695 = vadd.f32 0.0, %v694
        %v696 = vpop.f32.mrb[0].mxu0
        %697 = vdwg.mxu0
        %v698 = vadd.f32 %v582, %v649
        %v699 = vadd.f32 %v583, %v651
        %v700 = vadd.f32 %v584, %v692
        %v701 = vadd.f32 %v585, %v653
        %v702 = vadd.f32 %v586, %v655
        %v703 = vadd.f32 %v587, %v695
        %704 = vst [vmem:[#allocation2] sm:$0xff] %v698
        %705 = vst [vmem:[#allocation2 + $0x8] sm:$0xff] %v699
        %706 = vst [vmem:[#allocation2 + $0x10] sm:$0xff] %v700
        %707 = vst [vmem:[#allocation2 + $0x18] sm:$0xff] %v701
        %708 = vst [vmem:[#allocation2 + $0x20] sm:$0xff] %v702
        %709 = vst [vmem:[#allocation2 + $0x28] sm:$0xff] %v703
        %v710 = vld [vmem:[#allocation2] sm:$0xff]
        %v711 = vld [vmem:[#allocation2 + $0x8] sm:$0xff]
        %v712 = vld [vmem:[#allocation2 + $0x10] sm:$0xff]
        %v713 = vld [vmem:[#allocation2 + $0x18] sm:$0xff]
        %v714 = vld [vmem:[#allocation2 + $0x20] sm:$0xff]
        %v715 = vld [vmem:[#allocation2 + $0x28] sm:$0xff]
        %s716 = scalar_lea.vmem %s3, 24
        %v717 = vld [vmem:[%s716] sm:$0xf]
        %v718 = vld [vmem:[%s716 + $0x4] sm:$0xf]
        %v721 = vunpack.c.l.b16 %v717
        %v722 = vunpack.c.l.b16 %v718
        %v723 = vpack.c.b16 %v722, %v721
        %724 = vrot.lane.b32.xlu0 %v345, 110
        %v725 = vpop.permute.xlu0 %724
        %726 = vrot.lane.b32.xlu0 %v346, 110
        %v727 = vpop.permute.xlu0 %726
        %728 = vrot.lane.b32.xlu0 %v347, 110
        %v729 = vpop.permute.xlu0 %728
        %730 = vrot.lane.b32.xlu0 %v467, 110
        %v731 = vpop.permute.xlu0 %730
        %vm732 = vcmask 900096
        %v733 = vsel %vm732, %v725, %v727
        %v734 = vsel %vm732, %v727, %v729
        %v735 = vsel %vm732, %v729, %v731
        %v740 = vsel %vm351, %v723, 0
        %742 = vmatprep.subr.bf16.mxu0 %v734
        %743 = vmatpush1.bf16.msra.mxu0 %v733
        %744 = vmatprep.subr.bf16.mxu0 0
        %745 = vmatpush1.bf16.msra.mxu0 0
        %746 = vmatprep.subr.bf16.mxu0 0
        %747 = vmatpush1.bf16.msra.mxu0 0
        %748 = vmatprep.subr.bf16.mxu0 0
        %749 = vmatpush1.bf16.msra.mxu0 0
        %750 = vmatprep.subr.bf16.mxu0 0
        %751 = vmatpush1.bf16.msra.mxu0 0
        %752 = vmatprep.subr.bf16.mxu0 0
        %753 = vmatpush1.bf16.msra.mxu0 0
        %754 = vmatprep.subr.bf16.mxu0 0
        %755 = vmatpush1.bf16.msra.mxu0 0
        %756 = vmatprep.subr.bf16.mxu0 0
        %757 = vmatpush1.bf16.msra.mxu0 0
        %758 = vmatprep.subr.bf16.mxu0 0
        %759 = vmatpush1.bf16.msra.mxu0 0
        %760 = vmatprep.subr.bf16.mxu0 0
        %761 = vmatpush1.bf16.msra.mxu0 0
        %762 = vmatprep.subr.bf16.mxu0 0
        %763 = vmatpush1.bf16.msra.mxu0 0
        %764 = vmatprep.subr.bf16.mxu0 0
        %765 = vmatpush1.bf16.msra.mxu0 0
        %766 = vmatprep.subr.bf16.mxu0 0
        %767 = vmatpush1.bf16.msra.mxu0 0
        %768 = vmatprep.subr.bf16.mxu0 0
        %769 = vmatpush1.bf16.msra.mxu0 0
        %770 = vmatprep.subr.bf16.mxu0 0
        %771 = vmatpush1.bf16.msra.mxu0 0
        %772 = vmatprep.subr.bf16.mxu0 0
        %773 = vmatpush1.bf16.msra.mxu0 0
        %774 = vmatprep.mubr.bf16.mxu0 0
        %775 = vmatmul.mubr.bf16.gmra.mrb[0].mxu0 %v740
        %v776 = vpop.f32.mrb[0].mxu0
        %v777 = vadd.f32 0.0, %v776
        %v778 = vpop.f32.mrb[0].mxu0
        %v779 = vadd.f32 0.0, %v778
        %v780 = vpop.f32.mrb[0].mxu0
        %v781 = vadd.f32 0.0, %v780
        %v782 = vpop.f32.mrb[0].mxu0
        %v783 = vadd.f32 0.0, %v782
        %784 = vdwg.mxu0
        %785 = vmatprep.subr.bf16.mxu0 0
        %786 = vmatpush1.bf16.msra.mxu0 %v735
        %787 = vmatprep.subr.bf16.mxu0 0
        %788 = vmatpush1.bf16.msra.mxu0 0
        %789 = vmatprep.subr.bf16.mxu0 0
        %790 = vmatpush1.bf16.msra.mxu0 0
        %791 = vmatprep.subr.bf16.mxu0 0
        %792 = vmatpush1.bf16.msra.mxu0 0
        %793 = vmatprep.subr.bf16.mxu0 0
        %794 = vmatpush1.bf16.msra.mxu0 0
        %795 = vmatprep.subr.bf16.mxu0 0
        %796 = vmatpush1.bf16.msra.mxu0 0
        %797 = vmatprep.subr.bf16.mxu0 0
        %798 = vmatpush1.bf16.msra.mxu0 0
        %799 = vmatprep.subr.bf16.mxu0 0
        %800 = vmatpush1.bf16.msra.mxu0 0
        %801 = vmatprep.subr.bf16.mxu0 0
        %802 = vmatpush1.bf16.msra.mxu0 0
        %803 = vmatprep.subr.bf16.mxu0 0
        %804 = vmatpush1.bf16.msra.mxu0 0
        %805 = vmatprep.subr.bf16.mxu0 0
        %806 = vmatpush1.bf16.msra.mxu0 0
        %807 = vmatprep.subr.bf16.mxu0 0
        %808 = vmatpush1.bf16.msra.mxu0 0
        %809 = vmatprep.subr.bf16.mxu0 0
        %810 = vmatpush1.bf16.msra.mxu0 0
        %811 = vmatprep.subr.bf16.mxu0 0
        %812 = vmatpush1.bf16.msra.mxu0 0
        %813 = vmatprep.subr.bf16.mxu0 0
        %814 = vmatpush1.bf16.msra.mxu0 0
        %815 = vmatprep.subr.bf16.mxu0 0
        %816 = vmatpush1.bf16.msra.mxu0 0
        %817 = vmatprep.mubr.bf16.mxu0 0
        %818 = vmatmul.mubr.bf16.gmra.mrb[0].mxu0 %v740
        %v819 = vpop.f32.mrb[0].mxu0
        %v820 = vadd.f32 0.0, %v819
        %v821 = vpop.f32.mrb[0].mxu0
        %v822 = vpop.f32.mrb[0].mxu0
        %v823 = vadd.f32 0.0, %v822
        %v824 = vpop.f32.mrb[0].mxu0
        %825 = vdwg.mxu0
        %v826 = vadd.f32 %v710, %v777
        %v827 = vadd.f32 %v711, %v779
        %v828 = vadd.f32 %v712, %v820
        %v829 = vadd.f32 %v713, %v781
        %v830 = vadd.f32 %v714, %v783
        %v831 = vadd.f32 %v715, %v823
        %832 = vst [vmem:[#allocation2] sm:$0xff] %v826
        %833 = vst [vmem:[#allocation2 + $0x8] sm:$0xff] %v827
        %834 = vst [vmem:[#allocation2 + $0x10] sm:$0xff] %v828
        %835 = vst [vmem:[#allocation2 + $0x18] sm:$0xff] %v829
        %836 = vst [vmem:[#allocation2 + $0x20] sm:$0xff] %v830
        %837 = vst [vmem:[#allocation2 + $0x28] sm:$0xff] %v831
        %v838 = vld [vmem:[#allocation2] sm:$0xff]
        %v839 = vld [vmem:[#allocation2 + $0x8] sm:$0xff]
        %v840 = vld [vmem:[#allocation2 + $0x10] sm:$0xff]
        %v841 = vld [vmem:[#allocation2 + $0x18] sm:$0xff]
        %v842 = vld [vmem:[#allocation2 + $0x20] sm:$0xff]
        %v843 = vld [vmem:[#allocation2 + $0x28] sm:$0xff]
        %s844 = scalar_lea.vmem %s3, 32
        %v845 = vld [vmem:[%s844] sm:$0xf]
        %v846 = vld [vmem:[%s844 + $0x4] sm:$0xf]
        %v849 = vunpack.c.l.b16 %v845
        %v850 = vunpack.c.l.b16 %v846
        %v851 = vpack.c.b16 %v850, %v849
        %852 = vrot.lane.b32.xlu0 %v345, 109
        %v853 = vpop.permute.xlu0 %852
        %854 = vrot.lane.b32.xlu0 %v346, 109
        %v855 = vpop.permute.xlu0 %854
        %856 = vrot.lane.b32.xlu0 %v347, 109
        %v857 = vpop.permute.xlu0 %856
        %858 = vrot.lane.b32.xlu0 %v467, 109
        %v859 = vpop.permute.xlu0 %858
        %vm860 = vcmask 891904
        %v861 = vsel %vm860, %v853, %v855
        %v862 = vsel %vm860, %v855, %v857
        %v863 = vsel %vm860, %v857, %v859
        %v868 = vsel %vm351, %v851, 0
        %870 = vmatprep.subr.bf16.mxu0 %v862
        %871 = vmatpush1.bf16.msra.mxu0 %v861
        %872 = vmatprep.subr.bf16.mxu0 0
        %873 = vmatpush1.bf16.msra.mxu0 0
        %874 = vmatprep.subr.bf16.mxu0 0
        %875 = vmatpush1.bf16.msra.mxu0 0
        %876 = vmatprep.subr.bf16.mxu0 0
        %877 = vmatpush1.bf16.msra.mxu0 0
        %878 = vmatprep.subr.bf16.mxu0 0
        %879 = vmatpush1.bf16.msra.mxu0 0
        %880 = vmatprep.subr.bf16.mxu0 0
        %881 = vmatpush1.bf16.msra.mxu0 0
        %882 = vmatprep.subr.bf16.mxu0 0
        %883 = vmatpush1.bf16.msra.mxu0 0
        %884 = vmatprep.subr.bf16.mxu0 0
        %885 = vmatpush1.bf16.msra.mxu0 0
        %886 = vmatprep.subr.bf16.mxu0 0
        %887 = vmatpush1.bf16.msra.mxu0 0
        %888 = vmatprep.subr.bf16.mxu0 0
        %889 = vmatpush1.bf16.msra.mxu0 0
        %890 = vmatprep.subr.bf16.mxu0 0
        %891 = vmatpush1.bf16.msra.mxu0 0
        %892 = vmatprep.subr.bf16.mxu0 0
        %893 = vmatpush1.bf16.msra.mxu0 0
        %894 = vmatprep.subr.bf16.mxu0 0
        %895 = vmatpush1.bf16.msra.mxu0 0
        %896 = vmatprep.subr.bf16.mxu0 0
        %897 = vmatpush1.bf16.msra.mxu0 0
        %898 = vmatprep.subr.bf16.mxu0 0
        %899 = vmatpush1.bf16.msra.mxu0 0
        %900 = vmatprep.subr.bf16.mxu0 0
        %901 = vmatpush1.bf16.msra.mxu0 0
        %902 = vmatprep.mubr.bf16.mxu0 0
        %903 = vmatmul.mubr.bf16.gmra.mrb[0].mxu0 %v868
        %v904 = vpop.f32.mrb[0].mxu0
        %v905 = vadd.f32 0.0, %v904
        %v906 = vpop.f32.mrb[0].mxu0
        %v907 = vadd.f32 0.0, %v906
        %v908 = vpop.f32.mrb[0].mxu0
        %v909 = vadd.f32 0.0, %v908
        %v910 = vpop.f32.mrb[0].mxu0
        %v911 = vadd.f32 0.0, %v910
        %912 = vdwg.mxu0
        %913 = vmatprep.subr.bf16.mxu0 0
        %914 = vmatpush1.bf16.msra.mxu0 %v863
        %915 = vmatprep.subr.bf16.mxu0 0
        %916 = vmatpush1.bf16.msra.mxu0 0
        %917 = vmatprep.subr.bf16.mxu0 0
        %918 = vmatpush1.bf16.msra.mxu0 0
        %919 = vmatprep.subr.bf16.mxu0 0
        %920 = vmatpush1.bf16.msra.mxu0 0
        %921 = vmatprep.subr.bf16.mxu0 0
        %922 = vmatpush1.bf16.msra.mxu0 0
        %923 = vmatprep.subr.bf16.mxu0 0
        %924 = vmatpush1.bf16.msra.mxu0 0
        %925 = vmatprep.subr.bf16.mxu0 0
        %926 = vmatpush1.bf16.msra.mxu0 0
        %927 = vmatprep.subr.bf16.mxu0 0
        %928 = vmatpush1.bf16.msra.mxu0 0
        %929 = vmatprep.subr.bf16.mxu0 0
        %930 = vmatpush1.bf16.msra.mxu0 0
        %931 = vmatprep.subr.bf16.mxu0 0
        %932 = vmatpush1.bf16.msra.mxu0 0
        %933 = vmatprep.subr.bf16.mxu0 0
        %934 = vmatpush1.bf16.msra.mxu0 0
        %935 = vmatprep.subr.bf16.mxu0 0
        %936 = vmatpush1.bf16.msra.mxu0 0
        %937 = vmatprep.subr.bf16.mxu0 0
        %938 = vmatpush1.bf16.msra.mxu0 0
        %939 = vmatprep.subr.bf16.mxu0 0
        %940 = vmatpush1.bf16.msra.mxu0 0
        %941 = vmatprep.subr.bf16.mxu0 0
        %942 = vmatpush1.bf16.msra.mxu0 0
        %943 = vmatprep.subr.bf16.mxu0 0
        %944 = vmatpush1.bf16.msra.mxu0 0
        %945 = vmatprep.mubr.bf16.mxu0 0
        %946 = vmatmul.mubr.bf16.gmra.mrb[0].mxu0 %v868
        %v947 = vpop.f32.mrb[0].mxu0
        %v948 = vadd.f32 0.0, %v947
        %v949 = vpop.f32.mrb[0].mxu0
        %v950 = vpop.f32.mrb[0].mxu0
        %v951 = vadd.f32 0.0, %v950
        %v952 = vpop.f32.mrb[0].mxu0
        %953 = vdwg.mxu0
        %v954 = vadd.f32 %v838, %v905
        %v955 = vadd.f32 %v839, %v907
        %v956 = vadd.f32 %v840, %v948
        %v957 = vadd.f32 %v841, %v909
        %v958 = vadd.f32 %v842, %v911
        %v959 = vadd.f32 %v843, %v951
        %960 = vst [vmem:[#allocation2] sm:$0xff] %v954
        %961 = vst [vmem:[#allocation2 + $0x8] sm:$0xff] %v955
        %962 = vst [vmem:[#allocation2 + $0x10] sm:$0xff] %v956
        %963 = vst [vmem:[#allocation2 + $0x18] sm:$0xff] %v957
        %964 = vst [vmem:[#allocation2 + $0x20] sm:$0xff] %v958
        %965 = vst [vmem:[#allocation2 + $0x28] sm:$0xff] %v959
        %v966 = vld [vmem:[#allocation2] sm:$0xff]
        %v967 = vld [vmem:[#allocation2 + $0x8] sm:$0xff]
        %v968 = vld [vmem:[#allocation2 + $0x10] sm:$0xff]
        %v969 = vld [vmem:[#allocation2 + $0x18] sm:$0xff]
        %v970 = vld [vmem:[#allocation2 + $0x20] sm:$0xff]
        %v971 = vld [vmem:[#allocation2 + $0x28] sm:$0xff]
        %s972 = scalar_lea.vmem %s3, 40
        %v973 = vld [vmem:[%s972] sm:$0xf]
        %v974 = vld [vmem:[%s972 + $0x4] sm:$0xf]
        %v977 = vunpack.c.l.b16 %v973
        %v978 = vunpack.c.l.b16 %v974
        %v979 = vpack.c.b16 %v978, %v977
        %980 = vrot.lane.b32.xlu0 %v345, 108
        %v981 = vpop.permute.xlu0 %980
        %982 = vrot.lane.b32.xlu0 %v346, 108
        %v983 = vpop.permute.xlu0 %982
        %984 = vrot.lane.b32.xlu0 %v347, 108
        %v985 = vpop.permute.xlu0 %984
        %986 = vrot.lane.b32.xlu0 %v467, 108
        %v987 = vpop.permute.xlu0 %986
        %vm988 = vcmask 883712
        %v989 = vsel %vm988, %v981, %v983
        %v990 = vsel %vm988, %v983, %v985
        %v991 = vsel %vm988, %v985, %v987
        %v996 = vsel %vm351, %v979, 0
        %998 = vmatprep.subr.bf16.mxu0 %v990
        %999 = vmatpush1.bf16.msra.mxu0 %v989
        %1000 = vmatprep.subr.bf16.mxu0 0
        %1001 = vmatpush1.bf16.msra.mxu0 0
        %1002 = vmatprep.subr.bf16.mxu0 0
        %1003 = vmatpush1.bf16.msra.mxu0 0
        %1004 = vmatprep.subr.bf16.mxu0 0
        %1005 = vmatpush1.bf16.msra.mxu0 0
        %1006 = vmatprep.subr.bf16.mxu0 0
        %1007 = vmatpush1.bf16.msra.mxu0 0
        %1008 = vmatprep.subr.bf16.mxu0 0
        %1009 = vmatpush1.bf16.msra.mxu0 0
        %1010 = vmatprep.subr.bf16.mxu0 0
        %1011 = vmatpush1.bf16.msra.mxu0 0
        %1012 = vmatprep.subr.bf16.mxu0 0
        %1013 = vmatpush1.bf16.msra.mxu0 0
        %1014 = vmatprep.subr.bf16.mxu0 0
        %1015 = vmatpush1.bf16.msra.mxu0 0
        %1016 = vmatprep.subr.bf16.mxu0 0
        %1017 = vmatpush1.bf16.msra.mxu0 0
        %1018 = vmatprep.subr.bf16.mxu0 0
        %1019 = vmatpush1.bf16.msra.mxu0 0
        %1020 = vmatprep.subr.bf16.mxu0 0
        %1021 = vmatpush1.bf16.msra.mxu0 0
        %1022 = vmatprep.subr.bf16.mxu0 0
        %1023 = vmatpush1.bf16.msra.mxu0 0
        %1024 = vmatprep.subr.bf16.mxu0 0
        %1025 = vmatpush1.bf16.msra.mxu0 0
        %1026 = vmatprep.subr.bf16.mxu0 0
        %1027 = vmatpush1.bf16.msra.mxu0 0
        %1028 = vmatprep.subr.bf16.mxu0 0
        %1029 = vmatpush1.bf16.msra.mxu0 0
        %1030 = vmatprep.mubr.bf16.mxu0 0
        %1031 = vmatmul.mubr.bf16.gmra.mrb[0].mxu0 %v996
        %v1032 = vpop.f32.mrb[0].mxu0
        %v1033 = vadd.f32 0.0, %v1032
        %v1034 = vpop.f32.mrb[0].mxu0
        %v1035 = vadd.f32 0.0, %v1034
        %v1036 = vpop.f32.mrb[0].mxu0
        %v1037 = vadd.f32 0.0, %v1036
        %v1038 = vpop.f32.mrb[0].mxu0
        %v1039 = vadd.f32 0.0, %v1038
        %1040 = vdwg.mxu0
        %1041 = vmatprep.subr.bf16.mxu0 0
        %1042 = vmatpush1.bf16.msra.mxu0 %v991
        %1043 = vmatprep.subr.bf16.mxu0 0
        %1044 = vmatpush1.bf16.msra.mxu0 0
        %1045 = vmatprep.subr.bf16.mxu0 0
        %1046 = vmatpush1.bf16.msra.mxu0 0
        %1047 = vmatprep.subr.bf16.mxu0 0
        %1048 = vmatpush1.bf16.msra.mxu0 0
        %1049 = vmatprep.subr.bf16.mxu0 0
        %1050 = vmatpush1.bf16.msra.mxu0 0
        %1051 = vmatprep.subr.bf16.mxu0 0
        %1052 = vmatpush1.bf16.msra.mxu0 0
        %1053 = vmatprep.subr.bf16.mxu0 0
        %1054 = vmatpush1.bf16.msra.mxu0 0
        %1055 = vmatprep.subr.bf16.mxu0 0
        %1056 = vmatpush1.bf16.msra.mxu0 0
        %1057 = vmatprep.subr.bf16.mxu0 0
        %1058 = vmatpush1.bf16.msra.mxu0 0
        %1059 = vmatprep.subr.bf16.mxu0 0
        %1060 = vmatpush1.bf16.msra.mxu0 0
        %1061 = vmatprep.subr.bf16.mxu0 0
        %1062 = vmatpush1.bf16.msra.mxu0 0
        %1063 = vmatprep.subr.bf16.mxu0 0
        %1064 = vmatpush1.bf16.msra.mxu0 0
        %1065 = vmatprep.subr.bf16.mxu0 0
        %1066 = vmatpush1.bf16.msra.mxu0 0
        %1067 = vmatprep.subr.bf16.mxu0 0
        %1068 = vmatpush1.bf16.msra.mxu0 0
        %1069 = vmatprep.subr.bf16.mxu0 0
        %1070 = vmatpush1.bf16.msra.mxu0 0
        %1071 = vmatprep.subr.bf16.mxu0 0
        %1072 = vmatpush1.bf16.msra.mxu0 0
        %1073 = vmatprep.mubr.bf16.mxu0 0
        %1074 = vmatmul.mubr.bf16.gmra.mrb[0].mxu0 %v996
        %v1075 = vpop.f32.mrb[0].mxu0
        %v1076 = vadd.f32 0.0, %v1075
        %v1077 = vpop.f32.mrb[0].mxu0
        %v1078 = vpop.f32.mrb[0].mxu0
        %v1079 = vadd.f32 0.0, %v1078
        %v1080 = vpop.f32.mrb[0].mxu0
        %1081 = vdwg.mxu0
        %v1082 = vadd.f32 %v966, %v1033
        %v1083 = vadd.f32 %v967, %v1035
        %v1084 = vadd.f32 %v968, %v1076
        %v1085 = vadd.f32 %v969, %v1037
        %v1086 = vadd.f32 %v970, %v1039
        %v1087 = vadd.f32 %v971, %v1079
        %1088 = vst [vmem:[#allocation2] sm:$0xff] %v1082
        %1089 = vst [vmem:[#allocation2 + $0x8] sm:$0xff] %v1083
        %1090 = vst [vmem:[#allocation2 + $0x10] sm:$0xff] %v1084
        %1091 = vst [vmem:[#allocation2 + $0x18] sm:$0xff] %v1085
        %1092 = vst [vmem:[#allocation2 + $0x20] sm:$0xff] %v1086
        %1093 = vst [vmem:[#allocation2 + $0x28] sm:$0xff] %v1087
        %v1094 = vld [vmem:[#allocation2] sm:$0xff]
        %v1095 = vld [vmem:[#allocation2 + $0x8] sm:$0xff]
        %v1096 = vld [vmem:[#allocation2 + $0x10] sm:$0xff]
        %v1097 = vld [vmem:[#allocation2 + $0x18] sm:$0xff]
        %v1098 = vld [vmem:[#allocation2 + $0x20] sm:$0xff]
        %v1099 = vld [vmem:[#allocation2 + $0x28] sm:$0xff]
        %s1100 = scalar_lea.vmem %s3, 48
        %v1101 = vld [vmem:[%s1100] sm:$0xf]
        %v1102 = vld [vmem:[%s1100 + $0x4] sm:$0xf]
        %v1105 = vunpack.c.l.b16 %v1101
        %v1106 = vunpack.c.l.b16 %v1102
        %v1107 = vpack.c.b16 %v1106, %v1105
        %1108 = vrot.lane.b32.xlu0 %v345, 92
        %v1109 = vpop.permute.xlu0 %1108
        %1110 = vrot.lane.b32.xlu0 %v346, 92
        %v1111 = vpop.permute.xlu0 %1110
        %1112 = vrot.lane.b32.xlu0 %v347, 92
        %v1113 = vpop.permute.xlu0 %1112
        %1114 = vrot.lane.b32.xlu0 %v467, 92
        %v1115 = vpop.permute.xlu0 %1114
        %vm1116 = vcmask 752640
        %v1117 = vsel %vm1116, %v1109, %v1111
        %v1118 = vsel %vm1116, %v1111, %v1113
        %v1119 = vsel %vm1116, %v1113, %v1115
        %v1124 = vsel %vm351, %v1107, 0
        %1126 = vmatprep.subr.bf16.mxu0 %v1118
        %1127 = vmatpush1.bf16.msra.mxu0 %v1117
        %1128 = vmatprep.subr.bf16.mxu0 0
        %1129 = vmatpush1.bf16.msra.mxu0 0
        %1130 = vmatprep.subr.bf16.mxu0 0
        %1131 = vmatpush1.bf16.msra.mxu0 0
        %1132 = vmatprep.subr.bf16.mxu0 0
        %1133 = vmatpush1.bf16.msra.mxu0 0
        %1134 = vmatprep.subr.bf16.mxu0 0
        %1135 = vmatpush1.bf16.msra.mxu0 0
        %1136 = vmatprep.subr.bf16.mxu0 0
        %1137 = vmatpush1.bf16.msra.mxu0 0
        %1138 = vmatprep.subr.bf16.mxu0 0
        %1139 = vmatpush1.bf16.msra.mxu0 0
        %1140 = vmatprep.subr.bf16.mxu0 0
        %1141 = vmatpush1.bf16.msra.mxu0 0
        %1142 = vmatprep.subr.bf16.mxu0 0
        %1143 = vmatpush1.bf16.msra.mxu0 0
        %1144 = vmatprep.subr.bf16.mxu0 0
        %1145 = vmatpush1.bf16.msra.mxu0 0
        %1146 = vmatprep.subr.bf16.mxu0 0
        %1147 = vmatpush1.bf16.msra.mxu0 0
        %1148 = vmatprep.subr.bf16.mxu0 0
        %1149 = vmatpush1.bf16.msra.mxu0 0
        %1150 = vmatprep.subr.bf16.mxu0 0
        %1151 = vmatpush1.bf16.msra.mxu0 0
        %1152 = vmatprep.subr.bf16.mxu0 0
        %1153 = vmatpush1.bf16.msra.mxu0 0
        %1154 = vmatprep.subr.bf16.mxu0 0
        %1155 = vmatpush1.bf16.msra.mxu0 0
        %1156 = vmatprep.subr.bf16.mxu0 0
        %1157 = vmatpush1.bf16.msra.mxu0 0
        %1158 = vmatprep.mubr.bf16.mxu0 0
        %1159 = vmatmul.mubr.bf16.gmra.mrb[0].mxu0 %v1124
        %v1160 = vpop.f32.mrb[0].mxu0
        %v1161 = vadd.f32 0.0, %v1160
        %v1162 = vpop.f32.mrb[0].mxu0
        %v1163 = vadd.f32 0.0, %v1162
        %v1164 = vpop.f32.mrb[0].mxu0
        %v1165 = vadd.f32 0.0, %v1164
        %v1166 = vpop.f32.mrb[0].mxu0
        %v1167 = vadd.f32 0.0, %v1166
        %1168 = vdwg.mxu0
        %1169 = vmatprep.subr.bf16.mxu0 0
        %1170 = vmatpush1.bf16.msra.mxu0 %v1119
        %1171 = vmatprep.subr.bf16.mxu0 0
        %1172 = vmatpush1.bf16.msra.mxu0 0
        %1173 = vmatprep.subr.bf16.mxu0 0
        %1174 = vmatpush1.bf16.msra.mxu0 0
        %1175 = vmatprep.subr.bf16.mxu0 0
        %1176 = vmatpush1.bf16.msra.mxu0 0
        %1177 = vmatprep.subr.bf16.mxu0 0
        %1178 = vmatpush1.bf16.msra.mxu0 0
        %1179 = vmatprep.subr.bf16.mxu0 0
        %1180 = vmatpush1.bf16.msra.mxu0 0
        %1181 = vmatprep.subr.bf16.mxu0 0
        %1182 = vmatpush1.bf16.msra.mxu0 0
        %1183 = vmatprep.subr.bf16.mxu0 0
        %1184 = vmatpush1.bf16.msra.mxu0 0
        %1185 = vmatprep.subr.bf16.mxu0 0
        %1186 = vmatpush1.bf16.msra.mxu0 0
        %1187 = vmatprep.subr.bf16.mxu0 0
        %1188 = vmatpush1.bf16.msra.mxu0 0
        %1189 = vmatprep.subr.bf16.mxu0 0
        %1190 = vmatpush1.bf16.msra.mxu0 0
        %1191 = vmatprep.subr.bf16.mxu0 0
        %1192 = vmatpush1.bf16.msra.mxu0 0
        %1193 = vmatprep.subr.bf16.mxu0 0
        %1194 = vmatpush1.bf16.msra.mxu0 0
        %1195 = vmatprep.subr.bf16.mxu0 0
        %1196 = vmatpush1.bf16.msra.mxu0 0
        %1197 = vmatprep.subr.bf16.mxu0 0
        %1198 = vmatpush1.bf16.msra.mxu0 0
        %1199 = vmatprep.subr.bf16.mxu0 0
        %1200 = vmatpush1.bf16.msra.mxu0 0
        %1201 = vmatprep.mubr.bf16.mxu0 0
        %1202 = vmatmul.mubr.bf16.gmra.mrb[0].mxu0 %v1124
        %v1203 = vpop.f32.mrb[0].mxu0
        %v1204 = vadd.f32 0.0, %v1203
        %v1205 = vpop.f32.mrb[0].mxu0
        %v1206 = vpop.f32.mrb[0].mxu0
        %v1207 = vadd.f32 0.0, %v1206
        %v1208 = vpop.f32.mrb[0].mxu0
        %1209 = vdwg.mxu0
        %v1210 = vadd.f32 %v1094, %v1161
        %v1211 = vadd.f32 %v1095, %v1163
        %v1212 = vadd.f32 %v1096, %v1204
        %v1213 = vadd.f32 %v1097, %v1165
        %v1214 = vadd.f32 %v1098, %v1167
        %v1215 = vadd.f32 %v1099, %v1207
        %1216 = vst [vmem:[#allocation2] sm:$0xff] %v1210
        %1217 = vst [vmem:[#allocation2 + $0x8] sm:$0xff] %v1211
        %1218 = vst [vmem:[#allocation2 + $0x10] sm:$0xff] %v1212
        %1219 = vst [vmem:[#allocation2 + $0x18] sm:$0xff] %v1213
        %1220 = vst [vmem:[#allocation2 + $0x20] sm:$0xff] %v1214
        %1221 = vst [vmem:[#allocation2 + $0x28] sm:$0xff] %v1215
        %v1222 = vld [vmem:[#allocation2] sm:$0xff]
        %v1223 = vld [vmem:[#allocation2 + $0x8] sm:$0xff]
        %v1224 = vld [vmem:[#allocation2 + $0x10] sm:$0xff]
        %v1225 = vld [vmem:[#allocation2 + $0x18] sm:$0xff]
        %v1226 = vld [vmem:[#allocation2 + $0x20] sm:$0xff]
        %v1227 = vld [vmem:[#allocation2 + $0x28] sm:$0xff]
        %s1228 = scalar_lea.vmem %s3, 56
        %v1229 = vld [vmem:[%s1228] sm:$0xf]
        %v1230 = vld [vmem:[%s1228 + $0x4] sm:$0xf]
        %v1233 = vunpack.c.l.b16 %v1229
        %v1234 = vunpack.c.l.b16 %v1230
        %v1235 = vpack.c.b16 %v1234, %v1233
        %1236 = vrot.lane.b32.xlu0 %v345, 91
        %v1237 = vpop.permute.xlu0 %1236
        %1238 = vrot.lane.b32.xlu0 %v346, 91
        %v1239 = vpop.permute.xlu0 %1238
        %1240 = vrot.lane.b32.xlu0 %v347, 91
        %v1241 = vpop.permute.xlu0 %1240
        %1242 = vrot.lane.b32.xlu0 %v467, 91
        %v1243 = vpop.permute.xlu0 %1242
        %vm1244 = vcmask 744448
        %v1245 = vsel %vm1244, %v1237, %v1239
        %v1246 = vsel %vm1244, %v1239, %v1241
        %v1247 = vsel %vm1244, %v1241, %v1243
        %v1252 = vsel %vm351, %v1235, 0
        %1254 = vmatprep.subr.bf16.mxu0 %v1246
        %1255 = vmatpush1.bf16.msra.mxu0 %v1245
        %1256 = vmatprep.subr.bf16.mxu0 0
        %1257 = vmatpush1.bf16.msra.mxu0 0
        %1258 = vmatprep.subr.bf16.mxu0 0
        %1259 = vmatpush1.bf16.msra.mxu0 0
        %1260 = vmatprep.subr.bf16.mxu0 0
        %1261 = vmatpush1.bf16.msra.mxu0 0
        %1262 = vmatprep.subr.bf16.mxu0 0
        %1263 = vmatpush1.bf16.msra.mxu0 0
        %1264 = vmatprep.subr.bf16.mxu0 0
        %1265 = vmatpush1.bf16.msra.mxu0 0
        %1266 = vmatprep.subr.bf16.mxu0 0
        %1267 = vmatpush1.bf16.msra.mxu0 0
        %1268 = vmatprep.subr.bf16.mxu0 0
        %1269 = vmatpush1.bf16.msra.mxu0 0
        %1270 = vmatprep.subr.bf16.mxu0 0
        %1271 = vmatpush1.bf16.msra.mxu0 0
        %1272 = vmatprep.subr.bf16.mxu0 0
        %1273 = vmatpush1.bf16.msra.mxu0 0
        %1274 = vmatprep.subr.bf16.mxu0 0
        %1275 = vmatpush1.bf16.msra.mxu0 0
        %1276 = vmatprep.subr.bf16.mxu0 0
        %1277 = vmatpush1.bf16.msra.mxu0 0
        %1278 = vmatprep.subr.bf16.mxu0 0
        %1279 = vmatpush1.bf16.msra.mxu0 0
        %1280 = vmatprep.subr.bf16.mxu0 0
        %1281 = vmatpush1.bf16.msra.mxu0 0
        %1282 = vmatprep.subr.bf16.mxu0 0
        %1283 = vmatpush1.bf16.msra.mxu0 0
        %1284 = vmatprep.subr.bf16.mxu0 0
        %1285 = vmatpush1.bf16.msra.mxu0 0
        %1286 = vmatprep.mubr.bf16.mxu0 0
        %1287 = vmatmul.mubr.bf16.gmra.mrb[0].mxu0 %v1252
        %v1288 = vpop.f32.mrb[0].mxu0
        %v1289 = vadd.f32 0.0, %v1288
        %v1290 = vpop.f32.mrb[0].mxu0
        %v1291 = vadd.f32 0.0, %v1290
        %v1292 = vpop.f32.mrb[0].mxu0
        %v1293 = vadd.f32 0.0, %v1292
        %v1294 = vpop.f32.mrb[0].mxu0
        %v1295 = vadd.f32 0.0, %v1294
        %1296 = vdwg.mxu0
        %1297 = vmatprep.subr.bf16.mxu0 0
        %1298 = vmatpush1.bf16.msra.mxu0 %v1247
        %1299 = vmatprep.subr.bf16.mxu0 0
        %1300 = vmatpush1.bf16.msra.mxu0 0
        %1301 = vmatprep.subr.bf16.mxu0 0
        %1302 = vmatpush1.bf16.msra.mxu0 0
        %1303 = vmatprep.subr.bf16.mxu0 0
        %1304 = vmatpush1.bf16.msra.mxu0 0
        %1305 = vmatprep.subr.bf16.mxu0 0
        %1306 = vmatpush1.bf16.msra.mxu0 0
        %1307 = vmatprep.subr.bf16.mxu0 0
        %1308 = vmatpush1.bf16.msra.mxu0 0
        %1309 = vmatprep.subr.bf16.mxu0 0
        %1310 = vmatpush1.bf16.msra.mxu0 0
        %1311 = vmatprep.subr.bf16.mxu0 0
        %1312 = vmatpush1.bf16.msra.mxu0 0
        %1313 = vmatprep.subr.bf16.mxu0 0
        %1314 = vmatpush1.bf16.msra.mxu0 0
        %1315 = vmatprep.subr.bf16.mxu0 0
        %1316 = vmatpush1.bf16.msra.mxu0 0
        %1317 = vmatprep.subr.bf16.mxu0 0
        %1318 = vmatpush1.bf16.msra.mxu0 0
        %1319 = vmatprep.subr.bf16.mxu0 0
        %1320 = vmatpush1.bf16.msra.mxu0 0
        %1321 = vmatprep.subr.bf16.mxu0 0
        %1322 = vmatpush1.bf16.msra.mxu0 0
        %1323 = vmatprep.subr.bf16.mxu0 0
        %1324 = vmatpush1.bf16.msra.mxu0 0
        %1325 = vmatprep.subr.bf16.mxu0 0
        %1326 = vmatpush1.bf16.msra.mxu0 0
        %1327 = vmatprep.subr.bf16.mxu0 0
        %1328 = vmatpush1.bf16.msra.mxu0 0
        %1329 = vmatprep.mubr.bf16.mxu0 0
        %1330 = vmatmul.mubr.bf16.gmra.mrb[0].mxu0 %v1252
        %v1331 = vpop.f32.mrb[0].mxu0
        %v1332 = vadd.f32 0.0, %v1331
        %v1333 = vpop.f32.mrb[0].mxu0
        %v1334 = vpop.f32.mrb[0].mxu0
        %v1335 = vadd.f32 0.0, %v1334
        %v1336 = vpop.f32.mrb[0].mxu0
        %1337 = vdwg.mxu0
        %v1338 = vadd.f32 %v1222, %v1289
        %v1339 = vadd.f32 %v1223, %v1291
        %v1340 = vadd.f32 %v1224, %v1332
        %v1341 = vadd.f32 %v1225, %v1293
        %v1342 = vadd.f32 %v1226, %v1295
        %v1343 = vadd.f32 %v1227, %v1335
        %1344 = vst [vmem:[#allocation2] sm:$0xff] %v1338
        %1345 = vst [vmem:[#allocation2 + $0x8] sm:$0xff] %v1339
        %1346 = vst [vmem:[#allocation2 + $0x10] sm:$0xff] %v1340
        %1347 = vst [vmem:[#allocation2 + $0x18] sm:$0xff] %v1341
        %1348 = vst [vmem:[#allocation2 + $0x20] sm:$0xff] %v1342
        %1349 = vst [vmem:[#allocation2 + $0x28] sm:$0xff] %v1343
        %v1350 = vld [vmem:[#allocation2] sm:$0xff]
        %v1351 = vld [vmem:[#allocation2 + $0x8] sm:$0xff]
        %v1352 = vld [vmem:[#allocation2 + $0x10] sm:$0xff]
        %v1353 = vld [vmem:[#allocation2 + $0x18] sm:$0xff]
        %v1354 = vld [vmem:[#allocation2 + $0x20] sm:$0xff]
        %v1355 = vld [vmem:[#allocation2 + $0x28] sm:$0xff]
        %s1356 = scalar_lea.vmem %s3, 64
        %v1357 = vld [vmem:[%s1356] sm:$0xf]
        %v1358 = vld [vmem:[%s1356 + $0x4] sm:$0xf]
        %v1361 = vunpack.c.l.b16 %v1357
        %v1362 = vunpack.c.l.b16 %v1358
        %v1363 = vpack.c.b16 %v1362, %v1361
        %1364 = vrot.lane.b32.xlu0 %v345, 90
        %v1365 = vpop.permute.xlu0 %1364
        %1366 = vrot.lane.b32.xlu0 %v346, 90
        %v1367 = vpop.permute.xlu0 %1366
        %1368 = vrot.lane.b32.xlu0 %v347, 90
        %v1369 = vpop.permute.xlu0 %1368
        %1370 = vrot.lane.b32.xlu0 %v467, 90
        %v1371 = vpop.permute.xlu0 %1370
        %vm1372 = vcmask 736256
        %v1373 = vsel %vm1372, %v1365, %v1367
        %v1374 = vsel %vm1372, %v1367, %v1369
        %v1375 = vsel %vm1372, %v1369, %v1371
        %v1380 = vsel %vm351, %v1363, 0
        %1382 = vmatprep.subr.bf16.mxu0 %v1374
        %1383 = vmatpush1.bf16.msra.mxu0 %v1373
        %1384 = vmatprep.subr.bf16.mxu0 0
        %1385 = vmatpush1.bf16.msra.mxu0 0
        %1386 = vmatprep.subr.bf16.mxu0 0
        %1387 = vmatpush1.bf16.msra.mxu0 0
        %1388 = vmatprep.subr.bf16.mxu0 0
        %1389 = vmatpush1.bf16.msra.mxu0 0
        %1390 = vmatprep.subr.bf16.mxu0 0
        %1391 = vmatpush1.bf16.msra.mxu0 0
        %1392 = vmatprep.subr.bf16.mxu0 0
        %1393 = vmatpush1.bf16.msra.mxu0 0
        %1394 = vmatprep.subr.bf16.mxu0 0
        %1395 = vmatpush1.bf16.msra.mxu0 0
        %1396 = vmatprep.subr.bf16.mxu0 0
        %1397 = vmatpush1.bf16.msra.mxu0 0
        %1398 = vmatprep.subr.bf16.mxu0 0
        %1399 = vmatpush1.bf16.msra.mxu0 0
        %1400 = vmatprep.subr.bf16.mxu0 0
        %1401 = vmatpush1.bf16.msra.mxu0 0
        %1402 = vmatprep.subr.bf16.mxu0 0
        %1403 = vmatpush1.bf16.msra.mxu0 0
        %1404 = vmatprep.subr.bf16.mxu0 0
        %1405 = vmatpush1.bf16.msra.mxu0 0
        %1406 = vmatprep.subr.bf16.mxu0 0
        %1407 = vmatpush1.bf16.msra.mxu0 0
        %1408 = vmatprep.subr.bf16.mxu0 0
        %1409 = vmatpush1.bf16.msra.mxu0 0
        %1410 = vmatprep.subr.bf16.mxu0 0
        %1411 = vmatpush1.bf16.msra.mxu0 0
        %1412 = vmatprep.subr.bf16.mxu0 0
        %1413 = vmatpush1.bf16.msra.mxu0 0
        %1414 = vmatprep.mubr.bf16.mxu0 0
        %1415 = vmatmul.mubr.bf16.gmra.mrb[0].mxu0 %v1380
        %v1416 = vpop.f32.mrb[0].mxu0
        %v1417 = vadd.f32 0.0, %v1416
        %v1418 = vpop.f32.mrb[0].mxu0
        %v1419 = vadd.f32 0.0, %v1418
        %v1420 = vpop.f32.mrb[0].mxu0
        %v1421 = vadd.f32 0.0, %v1420
        %v1422 = vpop.f32.mrb[0].mxu0
        %v1423 = vadd.f32 0.0, %v1422
        %1424 = vdwg.mxu0
        %1425 = vmatprep.subr.bf16.mxu0 0
        %1426 = vmatpush1.bf16.msra.mxu0 %v1375
        %1427 = vmatprep.subr.bf16.mxu0 0
        %1428 = vmatpush1.bf16.msra.mxu0 0
        %1429 = vmatprep.subr.bf16.mxu0 0
        %1430 = vmatpush1.bf16.msra.mxu0 0
        %1431 = vmatprep.subr.bf16.mxu0 0
        %1432 = vmatpush1.bf16.msra.mxu0 0
        %1433 = vmatprep.subr.bf16.mxu0 0
        %1434 = vmatpush1.bf16.msra.mxu0 0
        %1435 = vmatprep.subr.bf16.mxu0 0
        %1436 = vmatpush1.bf16.msra.mxu0 0
        %1437 = vmatprep.subr.bf16.mxu0 0
        %1438 = vmatpush1.bf16.msra.mxu0 0
        %1439 = vmatprep.subr.bf16.mxu0 0
        %1440 = vmatpush1.bf16.msra.mxu0 0
        %1441 = vmatprep.subr.bf16.mxu0 0
        %1442 = vmatpush1.bf16.msra.mxu0 0
        %1443 = vmatprep.subr.bf16.mxu0 0
        %1444 = vmatpush1.bf16.msra.mxu0 0
        %1445 = vmatprep.subr.bf16.mxu0 0
        %1446 = vmatpush1.bf16.msra.mxu0 0
        %1447 = vmatprep.subr.bf16.mxu0 0
        %1448 = vmatpush1.bf16.msra.mxu0 0
        %1449 = vmatprep.subr.bf16.mxu0 0
        %1450 = vmatpush1.bf16.msra.mxu0 0
        %1451 = vmatprep.subr.bf16.mxu0 0
        %1452 = vmatpush1.bf16.msra.mxu0 0
        %1453 = vmatprep.subr.bf16.mxu0 0
        %1454 = vmatpush1.bf16.msra.mxu0 0
        %1455 = vmatprep.subr.bf16.mxu0 0
        %1456 = vmatpush1.bf16.msra.mxu0 0
        %1457 = vmatprep.mubr.bf16.mxu0 0
        %1458 = vmatmul.mubr.bf16.gmra.mrb[0].mxu0 %v1380
        %v1459 = vpop.f32.mrb[0].mxu0
        %v1460 = vadd.f32 0.0, %v1459
        %v1461 = vpop.f32.mrb[0].mxu0
        %v1462 = vpop.f32.mrb[0].mxu0
        %v1463 = vadd.f32 0.0, %v1462
        %v1464 = vpop.f32.mrb[0].mxu0
        %1465 = vdwg.mxu0
        %v1466 = vadd.f32 %v1350, %v1417
        %v1467 = vadd.f32 %v1351, %v1419
        %v1468 = vadd.f32 %v1352, %v1460
        %v1469 = vadd.f32 %v1353, %v1421
        %v1470 = vadd.f32 %v1354, %v1423
        %v1471 = vadd.f32 %v1355, %v1463
        %1472 = vst [vmem:[#allocation2] sm:$0xff] %v1466
        %1473 = vst [vmem:[#allocation2 + $0x8] sm:$0xff] %v1467
        %1474 = vst [vmem:[#allocation2 + $0x10] sm:$0xff] %v1468
        %1475 = vst [vmem:[#allocation2 + $0x18] sm:$0xff] %v1469
        %1476 = vst [vmem:[#allocation2 + $0x20] sm:$0xff] %v1470
        %1477 = vst [vmem:[#allocation2 + $0x28] sm:$0xff] %v1471
        %v1478 = vld [vmem:[#allocation2] sm:$0xff]
        %v1479 = vld [vmem:[#allocation2 + $0x8] sm:$0xff]
        %v1480 = vld [vmem:[#allocation2 + $0x10] sm:$0xff]
        %v1481 = vld [vmem:[#allocation2 + $0x18] sm:$0xff]
        %v1482 = vld [vmem:[#allocation2 + $0x20] sm:$0xff]
        %v1483 = vld [vmem:[#allocation2 + $0x28] sm:$0xff]
        %v1484 = vld [vmem:[%s306] sm:$0xff]
        %1486 = vset.pattern.permute.xlu0 0
        %1487 = vperm.xlu0 %1486, %v1484
        %v1488 = vpop.permute.xlu0 %1487
        %v1490 = vmul.f32 %v1478, %v1488
        %v1491 = vmul.f32 %v1479, %v1488
        %v1492 = vmul.f32 %v1480, %v1488
        %v1493 = vadd.f32 %v1481, %v1490
        %v1494 = vadd.f32 %v1482, %v1491
        %v1495 = vadd.f32 %v1483, %v1492
        %v1496 = vld [vmem:[%s310] sm:$0xff]
        %1498 = vset.pattern.permute.xlu0 0
        %1499 = vperm.xlu0 %1498, %v1496
        %v1500 = vpop.permute.xlu0 %1499
        %v1502 = vadd.f32 %v1493, %v1500
        %v1503 = vadd.f32 %v1494, %v1500
        %v1504 = vadd.f32 %v1495, %v1500
        %v1505 = vld [vmem:[%s6] sm:$0x7]
        %v1507 = vlaneseq
        %v1508 = vshrl.u32 %v1507, 7
        %v1509 = vsub.s32 0, %v1508
        %v1510 = vrot.slane %v1505, %v1509
        %v1511 = vlaneseq
        %v1512 = vshrl.u32 %v1511, 7
        %v1513 = vsub.s32 1, %v1512
        %v1514 = vrot.slane %v1505, %v1513
        %v1515 = vlaneseq
        %v1516 = vshrl.u32 %v1515, 7
        %v1517 = vsub.s32 2, %v1516
        %v1518 = vrot.slane %v1505, %v1517
        %v1522 = vmul.f32 %v1502, %v1510
        %v1523 = vmul.f32 %v1503, %v1514
        %v1524 = vmul.f32 %v1504, %v1518
        %v1525 = vadd.f32 %v1522, %v1523
        %v1526 = vadd.f32 %v1525, %v1524
        %1527 = vadd.xlane.f32.xlu0 %v1526
        %v1528 = vpop.xlane.xlu0 %1527
        %v1529 = vrot.slane %v1528, 4
        %v1530 = vadd.f32 %v1528, %v1529
        %v1531 = vrot.slane %v1530, 2
        %v1532 = vadd.f32 %v1530, %v1531
        %v1533 = vrot.slane %v1532, 1
        %v1534 = vadd.f32 %v1532, %v1533
        %s1535 = vtos %v1534
        %v1536 = vstv %s1535
        %v1537 = vrcp.pop 2048.0
        %v1538 = vmul.f32 %v1536, %v1537
        %v1539 = vsub.f32 %v1502, %v1538
        %v1540 = vsub.f32 %v1503, %v1538
        %v1541 = vsub.f32 %v1504, %v1538
        %v1542 = vmul.f32 %v1539, %v1510
        %v1543 = vmul.f32 %v1540, %v1514
        %v1544 = vmul.f32 %v1541, %v1518
        %v1545 = vmul.f32 %v1542, %v1542
        %v1546 = vmul.f32 %v1543, %v1543
        %v1547 = vmul.f32 %v1544, %v1544
        %v1548 = vadd.f32 %v1545, %v1546
        %v1549 = vadd.f32 %v1548, %v1547
        %1550 = vadd.xlane.f32.xlu0 %v1549
        %v1551 = vpop.xlane.xlu0 %1550
        %v1552 = vrot.slane %v1551, 4
        %v1553 = vadd.f32 %v1551, %v1552
        %v1554 = vrot.slane %v1553, 2
        %v1555 = vadd.f32 %v1553, %v1554
        %v1556 = vrot.slane %v1555, 1
        %v1557 = vadd.f32 %v1555, %v1556
        %s1558 = vtos %v1557
        %v1559 = vstv %s1558
        %v1560 = vmul.f32 %v1559, %v1537
        %v1561 = vadd.f32 %v1560, 1e-05
        %v1562 = vrsqrt.pop %v1561
        %v1563 = vmul.f32 %v1539, %v1562
        %v1564 = vmul.f32 %v1540, %v1562
        %v1565 = vmul.f32 %v1541, %v1562
        %v1566 = vld [vmem:[%s4] sm:$0xff]
        %v1567 = vld [vmem:[%s4 + $0x8] sm:$0xff]
        %v1568 = vld [vmem:[%s4 + $0x10] sm:$0xff]
        %v1569 = vmul.f32 %v1563, %v1566
        %v1570 = vmul.f32 %v1564, %v1567
        %v1571 = vmul.f32 %v1565, %v1568
        %v1572 = vld [vmem:[%s5] sm:$0xff]
        %v1573 = vld [vmem:[%s5 + $0x8] sm:$0xff]
        %v1574 = vld [vmem:[%s5 + $0x10] sm:$0xff]
        %v1575 = vadd.f32 %v1569, %v1572
        %v1576 = vadd.f32 %v1570, %v1573
        %v1577 = vadd.f32 %v1571, %v1574
        %v1578 = vmax.f32 %v1575, 0.0
        %v1579 = vmax.f32 %v1576, 0.0
        %v1580 = vmax.f32 %v1577, 0.0
        %v1581 = vpack.c.bf16 %v1578, %v1578
        %v1582 = vpack.c.bf16 %v1579, %v1579
        %v1583 = vpack.c.bf16 %v1580, %v1580
        %v1587 = vunpack.c.l.b16 %v1581
        %v1588 = vunpack.c.l.b16 %v1582
        %v1589 = vunpack.c.l.b16 %v1583
        %v1590 = vpack.c.b16 %v1588, %v1587
        %v1591 = vpack.c.b16 %v1589, %v1589
        %1594 = vst [vmem:[%s297] sm:$0xff] %v1590
        %1595 = vst [vmem:[%s297 + $0x8] sm:$0xf] %v1591
        %s1596 = sand.u32 %s191, 1
        %s1597 = scalar_lea.sflag [#allocation4], %s1596
        %s1598 = sand.u32 %s191, 1
        %s1599 = smul.addr %s1598, 12
        %s1600 = scalar_lea.vmem [#allocation3], %s1599
        // Predicated region
        $region49: #{unet_block_pallas.1} parent=47 // pred_check
          %p1601 = pneg %p201
        $region50: #{unet_block_pallas.1} parent=47 // pred_check_branch
          %1603 = sbr.rel (%p1601) target = $region52
        $region51: #{unet_block_pallas.1} parent=47 // pred_region
          %s1605 = ssub.s32 192, 192
          %1606 = vsyncadd %s1597, %s1605
          %s1607 = smul.addr %s21, 3
          %s1608 = smul.addr %s1607, 64
          %s1609 = scalar_lea.hbm %s7, %s1608
          %s1611 = sshll.u32 %s1600, 4
          %s1612 = int_to_ptr.vmem [resolvable:$true] %s1611
          %1614 = dma.vmem_to_hbm [thread:$0]  %s1612, 192, %s1609, %s1597
        $region52: #{unet_block_pallas.1} parent=47 // pred_fallthru
          _
      $region48: #{unet_block_pallas.1} parent=5 // pred_fallthru
        _
      %p1615 = scmp.le.s32.totalorder 2, %s16
      // Predicated region
      $region53: #{unet_block_pallas.1} parent=5 // pred_check
        %p1616 = pneg %p1615
      $region54: #{unet_block_pallas.1} parent=5 // pred_check_branch
        %1618 = sbr.rel (%p1616) target = $region56
      $region55: #{unet_block_pallas.1} parent=5 // pred_region
        %s1619 = ssub.s32 %s16, 2
        // Predicated region
        $region57: #{unet_block_pallas.1} parent=55 // pred_check
          %p1620 = pneg %p207
        $region58: #{unet_block_pallas.1} parent=55 // pred_check_branch
          %1622 = sbr.rel (%p1620) target = $region60
        $region59: #{unet_block_pallas.1} parent=55 // pred_region
          %s1623 = sand.u32 %s192, 1
          %s1624 = scalar_lea.sflag [#allocation4], %s1623
          %s1625 = sand.u32 %s192, 1
          %s1626 = smul.addr %s1625, 12
          %s1627 = scalar_lea.vmem [#allocation3], %s1626
          %1628 = dma.done %s1624, 192
        $region60: #{unet_block_pallas.1} parent=55 // pred_fallthru
          _
      $region56: #{unet_block_pallas.1} parent=5 // pred_fallthru
        _
    $region6: #{unet_block_pallas.1} parent=1 // loop_footer
      %s20 = sadd.s32 1, %s16
    $region7: #{unet_block_pallas.1} parent=1 // loop_footer_branch
      %15 = sbr.rel target = $region3
    $region8: #{unet_block_pallas.1} parent=1 // loop_exit
      _
    %1629 = vsyncpa [#allocation4], 1
    %s1630 = scalar_lea.sflag [#allocation4], 1
    %1631 = vsyncpa %s1630, 1

</llo_original>
